<compile_context>
chip_gen: v6e
topology: v6e:2x2x1
jax: 0.10.0
libtpu: 0.0.40
codegen_flags: <defaults>
</compile_context>

<pallas_src>
import jax
import jax.numpy as jnp
from jax.experimental import pallas as pl
from jax.experimental.pallas import tpu as pltpu


def _round_up(x: int, m: int) -> int:
    return ((x + m - 1) // m) * m


def _swish(h):
    # swish(h) = h * sigmoid(h); sigmoid via one tanh EUP push (exact, cheap).
    return h * (0.5 * jnp.tanh(0.5 * h) + 0.5)


def mlp_diffusion_kernel(
    x_ref,
    w1_ref, b1_ref,
    w2_ref, b2_ref,
    w3_ref, b3_ref,
    w4_ref, b4_ref,
    w5_ref, b5_ref,
    o_ref,
):
    """5 matmuls + 4 swish on one batch tile. Weights are bf16, accumulate f32."""
    cdt = w1_ref.dtype  # bf16 compute dtype for MXU inputs

    def dense(h, w_ref, b_ref):
        return jnp.dot(h.astype(cdt), w_ref[...],
                       preferred_element_type=jnp.float32) + b_ref[...]

    h = dense(x_ref[...], w1_ref, b1_ref)
    h = _swish(h)
    h = dense(h, w2_ref, b2_ref)
    h = _swish(h)
    h = dense(h, w3_ref, b3_ref)
    h = _swish(h)
    h = dense(h, w4_ref, b4_ref)
    h = _swish(h)
    out = dense(h, w5_ref, b5_ref)

    o_ref[...] = out.astype(o_ref.dtype)


def prepare_params(params, *, compute_dtype=jnp.bfloat16):
    """One-time prep: pad W1 rows to a sublane multiple, cast weights to bf16.

    Done once outside the hot path so mlp_diffusion() doesn't re-emit pad/cast
    XLA ops on every call.
    """
    prepared = []
    for i, (w, b) in enumerate(params):
        if i == 0:
            k = w.shape[0]
            k_pad = _round_up(k, 8)
            if k_pad != k:
                w = jnp.pad(w, ((0, k_pad - k), (0, 0)))  # zero rows => identical math
        prepared.append((w.astype(compute_dtype),
                         b.astype(jnp.float32).reshape(1, -1)))
    return prepared


def _pick_block_b(B: int, block_b: int) -> int:
    """Pick the batch tile: big (default 512), but keep >=2 grid steps when the
    batch allows (v7x megacore) without dropping tiles below 256 rows."""
    B8 = _round_up(B, 8)
    bb = min(block_b, B8)
    if B8 >= 2 * 256:
        bb = min(bb, max(256, _round_up(pl.cdiv(B8, 4), 8)))
    return max(8, _round_up(bb, 8))


def mlp_diffusion(x, prepared_params, *, block_b=512):
    """x: [B, input_dim + time_dim] float32.
    prepared_params: output of prepare_params() — (W[K,N] bf16, b[1,N] f32) x5."""
    B, d_in = x.shape
    (w1, b1), (w2, b2), (w3, b3), (w4, b4), (w5, b5) = prepared_params
    d_in_p = w1.shape[0]          # already padded to a multiple of 8
    hidden = w2.shape[0]
    out_dim = w5.shape[1]
    assert d_in <= d_in_p

    # --- batch tiling + single fused pad of x (features and batch together) ---
    bb = _pick_block_b(B, block_b)
    B_pad = _round_up(B, bb)
    pad_b, pad_f = B_pad - B, d_in_p - d_in
    if pad_b or pad_f:
        x = jnp.pad(x, ((0, pad_b), (0, pad_f)))

    grid = (B_pad // bb,)

    def full_spec(arr):
        # Un-tiled, constant block index: loaded once, resident across grid steps.
        return pl.BlockSpec(arr.shape, lambda i: (0, 0))

    in_specs = [
        pl.BlockSpec((bb, d_in_p), lambda i: (i, 0)),
        full_spec(w1), full_spec(b1),
        full_spec(w2), full_spec(b2),
        full_spec(w3), full_spec(b3),
        full_spec(w4), full_spec(b4),
        full_spec(w5), full_spec(b5),
    ]
    out_spec = pl.BlockSpec((bb, out_dim), lambda i: (i, 0))

    w_bytes = (2 * (d_in_p * hidden + 3 * hidden * hidden + hidden * out_dim)
               + 4 * (4 * hidden + out_dim))
    cost = pl.CostEstimate(
        flops=2 * B_pad * (d_in_p * hidden + 3 * hidden * hidden + hidden * out_dim),
        transcendentals=4 * B_pad * hidden,
        bytes_accessed=4 * B_pad * (d_in_p + out_dim) + w_bytes,
    )

    out = pl.pallas_call(
        mlp_diffusion_kernel,
        out_shape=jax.ShapeDtypeStruct((B_pad, out_dim), x.dtype),
        grid_spec=pltpu.PrefetchScalarGridSpec(
            num_scalar_prefetch=0,
            grid=grid,
            in_specs=in_specs,
            out_specs=out_spec,
        ),
        compiler_params=pltpu.CompilerParams(
            dimension_semantics=("parallel",),
        ),
        cost_estimate=cost,
    )(x, w1, b1, w2, b2, w3, b3, w4, b4, w5, b5)

    return out[:B]


def init_params(key, input_dim=2, time_dim=1, hidden_dim=128, output_dims=128):
    """Deterministic PyTorch-style (uniform) init for the 5 Linear layers (f32)."""
    dims = [
        (input_dim + time_dim, hidden_dim),
        (hidden_dim, hidden_dim),
        (hidden_dim, hidden_dim),
        (hidden_dim, hidden_dim),
        (hidden_dim, output_dims),
    ]
    params = []
    for (fan_in, fan_out) in dims:
        key, kw, kb = jax.random.split(key, 3)
        bound = 1.0 / jnp.sqrt(fan_in)
        # Stored as [K, N] so the kernel computes x @ W + b.
        w = jax.random.uniform(kw, (fan_in, fan_out), jnp.float32, -bound, bound)
        b = jax.random.uniform(kb, (1, fan_out), jnp.float32, -bound, bound)
        params.append((w, b))
    return params


def mlp_diffusion_ref(x, params):
    """Pure-f32 reference matching the PyTorch module."""
    h = x
    for i, (w, b) in enumerate(params):
        h = h @ w + b
        if i < len(params) - 1:
            h = jax.nn.sigmoid(h) * h
    return h


if __name__ == "__main__":
    key = jax.random.PRNGKey(0)
    k_params, k_x1, k_x2 = jax.random.split(key, 3)

    input_dim, time_dim, hidden_dim, output_dims = 2, 1, 128, 128
    params_f32 = init_params(k_params, input_dim, time_dim, hidden_dim, output_dims)
    params = prepare_params(params_f32)          # bf16 weights, padded W1, f32 biases

    # Tolerance budget: weights + activations enter the MXU in bf16 (per-element
    # rel err ~4e-3) with f32 accumulation over K=128 and exact tanh-sigmoid;
    # observed error is well under 2e-3, 5e-3 covers worst-case tails.
    atol = rtol = 5e-3

    # Main check: batch 512 -> tile 256, 2 grid steps (exercises the pipelined
    # grid and megacore "parallel" sharding on v7x).
    x = jax.random.normal(k_x1, (512, input_dim + time_dim), jnp.float32)
    out = jax.block_until_ready(mlp_diffusion(x, params))
    ref = mlp_diffusion_ref(x, params_f32)
    assert out.shape == (512, output_dims)
    assert jnp.allclose(out, ref, atol=atol, rtol=rtol), "mismatch vs reference (512)"

    # Ragged batch (not a multiple of the tile): exercises the fused padding path.
    x2 = jax.random.normal(k_x2, (20, input_dim + time_dim), jnp.float32)
    out2 = jax.block_until_ready(mlp_diffusion(x2, params))
    ref2 = mlp_diffusion_ref(x2, params_f32)
    assert out2.shape == (20, output_dims)
    assert jnp.allclose(out2, ref2, atol=atol, rtol=rtol), "mismatch vs reference (20)"

    print("KERNEL_OK")
</pallas_src>

<mosaic_0001>
module attributes {stable_mosaic.version = 11 : i64} {
  func.func @mlp_diffusion_kernel(%arg0: i32, %arg1: memref<256x8xf32, #tpu.memory_space<vmem>>, %arg2: memref<8x128xbf16, #tpu.memory_space<vmem>>, %arg3: memref<1x128xf32, #tpu.memory_space<vmem>>, %arg4: memref<128x128xbf16, #tpu.memory_space<vmem>>, %arg5: memref<1x128xf32, #tpu.memory_space<vmem>>, %arg6: memref<128x128xbf16, #tpu.memory_space<vmem>>, %arg7: memref<1x128xf32, #tpu.memory_space<vmem>>, %arg8: memref<128x128xbf16, #tpu.memory_space<vmem>>, %arg9: memref<1x128xf32, #tpu.memory_space<vmem>>, %arg10: memref<128x128xbf16, #tpu.memory_space<vmem>>, %arg11: memref<1x128xf32, #tpu.memory_space<vmem>>, %arg12: memref<256x128xf32, #tpu.memory_space<vmem>>) attributes {dimension_semantics = [#tpu.dimension_semantics<parallel>], iteration_bounds = array<i64: 2>, scalar_prefetch = 0 : i64, scratch_operands = 0 : i64, tpu.core_type = #tpu.core_type<tc>, window_params = [{transform_indices = @transform_0, window_bounds = array<i64: 256, 8>}, {pipeline_mode = #tpu.pipeline_mode<synchronous>, transform_indices = @transform_1, window_bounds = array<i64: 8, 128>}, {pipeline_mode = #tpu.pipeline_mode<synchronous>, transform_indices = @transform_2, window_bounds = array<i64: 1, 128>}, {pipeline_mode = #tpu.pipeline_mode<synchronous>, transform_indices = @transform_3, window_bounds = array<i64: 128, 128>}, {pipeline_mode = #tpu.pipeline_mode<synchronous>, transform_indices = @transform_4, window_bounds = array<i64: 1, 128>}, {pipeline_mode = #tpu.pipeline_mode<synchronous>, transform_indices = @transform_5, window_bounds = array<i64: 128, 128>}, {pipeline_mode = #tpu.pipeline_mode<synchronous>, transform_indices = @transform_6, window_bounds = array<i64: 1, 128>}, {pipeline_mode = #tpu.pipeline_mode<synchronous>, transform_indices = @transform_7, window_bounds = array<i64: 128, 128>}, {pipeline_mode = #tpu.pipeline_mode<synchronous>, transform_indices = @transform_8, window_bounds = array<i64: 1, 128>}, {pipeline_mode = #tpu.pipeline_mode<synchronous>, transform_indices = @transform_9, window_bounds = array<i64: 128, 128>}, {pipeline_mode = #tpu.pipeline_mode<synchronous>, transform_indices = @transform_10, window_bounds = array<i64: 1, 128>}, {transform_indices = @transform_11, window_bounds = array<i64: 256, 128>}]} {
    %c0 = arith.constant 0 : index
    %c0_0 = arith.constant 0 : index
    %0 = vector.load %arg1[%c0, %c0_0] : memref<256x8xf32, #tpu.memory_space<vmem>>, vector<256x8xf32>
    %1 = arith.truncf %0 : vector<256x8xf32> to vector<256x8xbf16>
    %c0_1 = arith.constant 0 : index
    %c0_2 = arith.constant 0 : index
    %2 = vector.load %arg2[%c0_1, %c0_2] : memref<8x128xbf16, #tpu.memory_space<vmem>>, vector<8x128xbf16>
    %cst = arith.constant dense<0.000000e+00> : vector<256x128xf32>
    %3 = tpu.matmul %1, %2, %cst {dimension_numbers = #tpu.dot_dimension_numbers<[1], [0], [0], [1], [0, 0, 1, 1], [], []>} : vector<256x8xbf16>, vector<8x128xbf16>, vector<256x128xf32> -> vector<256x128xf32>
    %c0_3 = arith.constant 0 : index
    %c0_4 = arith.constant 0 : index
    %4 = vector.load %arg3[%c0_3, %c0_4] : memref<1x128xf32, #tpu.memory_space<vmem>>, vector<1x128xf32>
    %5 = vector.broadcast %4 : vector<1x128xf32> to vector<256x128xf32>
    %6 = arith.addf %3, %5 : vector<256x128xf32>
    %cst_5 = arith.constant 5.000000e-01 : f32
    %7 = vector.broadcast %cst_5 : f32 to vector<256x128xf32>
    %8 = arith.mulf %7, %6 : vector<256x128xf32>
    %9 = math.tanh %8 : vector<256x128xf32>
    %cst_6 = arith.constant 5.000000e-01 : f32
    %10 = vector.broadcast %cst_6 : f32 to vector<256x128xf32>
    %11 = arith.mulf %10, %9 : vector<256x128xf32>
    %cst_7 = arith.constant 5.000000e-01 : f32
    %12 = vector.broadcast %cst_7 : f32 to vector<256x128xf32>
    %13 = arith.addf %11, %12 : vector<256x128xf32>
    %14 = arith.mulf %6, %13 : vector<256x128xf32>
    %15 = arith.truncf %14 : vector<256x128xf32> to vector<256x128xbf16>
    %c0_8 = arith.constant 0 : index
    %c0_9 = arith.constant 0 : index
    %16 = vector.load %arg4[%c0_8, %c0_9] : memref<128x128xbf16, #tpu.memory_space<vmem>>, vector<128x128xbf16>
    %cst_10 = arith.constant dense<0.000000e+00> : vector<256x128xf32>
    %17 = tpu.matmul %15, %16, %cst_10 {dimension_numbers = #tpu.dot_dimension_numbers<[1], [0], [0], [1], [0, 0, 1, 1], [], []>} : vector<256x128xbf16>, vector<128x128xbf16>, vector<256x128xf32> -> vector<256x128xf32>
    %c0_11 = arith.constant 0 : index
    %c0_12 = arith.constant 0 : index
    %18 = vector.load %arg5[%c0_11, %c0_12] : memref<1x128xf32, #tpu.memory_space<vmem>>, vector<1x128xf32>
    %19 = vector.broadcast %18 : vector<1x128xf32> to vector<256x128xf32>
    %20 = arith.addf %17, %19 : vector<256x128xf32>
    %cst_13 = arith.constant 5.000000e-01 : f32
    %21 = vector.broadcast %cst_13 : f32 to vector<256x128xf32>
    %22 = arith.mulf %21, %20 : vector<256x128xf32>
    %23 = math.tanh %22 : vector<256x128xf32>
    %cst_14 = arith.constant 5.000000e-01 : f32
    %24 = vector.broadcast %cst_14 : f32 to vector<256x128xf32>
    %25 = arith.mulf %24, %23 : vector<256x128xf32>
    %cst_15 = arith.constant 5.000000e-01 : f32
    %26 = vector.broadcast %cst_15 : f32 to vector<256x128xf32>
    %27 = arith.addf %25, %26 : vector<256x128xf32>
    %28 = arith.mulf %20, %27 : vector<256x128xf32>
    %29 = arith.truncf %28 : vector<256x128xf32> to vector<256x128xbf16>
    %c0_16 = arith.constant 0 : index
    %c0_17 = arith.constant 0 : index
    %30 = vector.load %arg6[%c0_16, %c0_17] : memref<128x128xbf16, #tpu.memory_space<vmem>>, vector<128x128xbf16>
    %cst_18 = arith.constant dense<0.000000e+00> : vector<256x128xf32>
    %31 = tpu.matmul %29, %30, %cst_18 {dimension_numbers = #tpu.dot_dimension_numbers<[1], [0], [0], [1], [0, 0, 1, 1], [], []>} : vector<256x128xbf16>, vector<128x128xbf16>, vector<256x128xf32> -> vector<256x128xf32>
    %c0_19 = arith.constant 0 : index
    %c0_20 = arith.constant 0 : index
    %32 = vector.load %arg7[%c0_19, %c0_20] : memref<1x128xf32, #tpu.memory_space<vmem>>, vector<1x128xf32>
    %33 = vector.broadcast %32 : vector<1x128xf32> to vector<256x128xf32>
    %34 = arith.addf %31, %33 : vector<256x128xf32>
    %cst_21 = arith.constant 5.000000e-01 : f32
    %35 = vector.broadcast %cst_21 : f32 to vector<256x128xf32>
    %36 = arith.mulf %35, %34 : vector<256x128xf32>
    %37 = math.tanh %36 : vector<256x128xf32>
    %cst_22 = arith.constant 5.000000e-01 : f32
    %38 = vector.broadcast %cst_22 : f32 to vector<256x128xf32>
    %39 = arith.mulf %38, %37 : vector<256x128xf32>
    %cst_23 = arith.constant 5.000000e-01 : f32
    %40 = vector.broadcast %cst_23 : f32 to vector<256x128xf32>
    %41 = arith.addf %39, %40 : vector<256x128xf32>
    %42 = arith.mulf %34, %41 : vector<256x128xf32>
    %43 = arith.truncf %42 : vector<256x128xf32> to vector<256x128xbf16>
    %c0_24 = arith.constant 0 : index
    %c0_25 = arith.constant 0 : index
    %44 = vector.load %arg8[%c0_24, %c0_25] : memref<128x128xbf16, #tpu.memory_space<vmem>>, vector<128x128xbf16>
    %cst_26 = arith.constant dense<0.000000e+00> : vector<256x128xf32>
    %45 = tpu.matmul %43, %44, %cst_26 {dimension_numbers = #tpu.dot_dimension_numbers<[1], [0], [0], [1], [0, 0, 1, 1], [], []>} : vector<256x128xbf16>, vector<128x128xbf16>, vector<256x128xf32> -> vector<256x128xf32>
    %c0_27 = arith.constant 0 : index
    %c0_28 = arith.constant 0 : index
    %46 = vector.load %arg9[%c0_27, %c0_28] : memref<1x128xf32, #tpu.memory_space<vmem>>, vector<1x128xf32>
    %47 = vector.broadcast %46 : vector<1x128xf32> to vector<256x128xf32>
    %48 = arith.addf %45, %47 : vector<256x128xf32>
    %cst_29 = arith.constant 5.000000e-01 : f32
    %49 = vector.broadcast %cst_29 : f32 to vector<256x128xf32>
    %50 = arith.mulf %49, %48 : vector<256x128xf32>
    %51 = math.tanh %50 : vector<256x128xf32>
    %cst_30 = arith.constant 5.000000e-01 : f32
    %52 = vector.broadcast %cst_30 : f32 to vector<256x128xf32>
    %53 = arith.mulf %52, %51 : vector<256x128xf32>
    %cst_31 = arith.constant 5.000000e-01 : f32
    %54 = vector.broadcast %cst_31 : f32 to vector<256x128xf32>
    %55 = arith.addf %53, %54 : vector<256x128xf32>
    %56 = arith.mulf %48, %55 : vector<256x128xf32>
    %57 = arith.truncf %56 : vector<256x128xf32> to vector<256x128xbf16>
    %c0_32 = arith.constant 0 : index
    %c0_33 = arith.constant 0 : index
    %58 = vector.load %arg10[%c0_32, %c0_33] : memref<128x128xbf16, #tpu.memory_space<vmem>>, vector<128x128xbf16>
    %cst_34 = arith.constant dense<0.000000e+00> : vector<256x128xf32>
    %59 = tpu.matmul %57, %58, %cst_34 {dimension_numbers = #tpu.dot_dimension_numbers<[1], [0], [0], [1], [0, 0, 1, 1], [], []>} : vector<256x128xbf16>, vector<128x128xbf16>, vector<256x128xf32> -> vector<256x128xf32>
    %c0_35 = arith.constant 0 : index
    %c0_36 = arith.constant 0 : index
    %60 = vector.load %arg11[%c0_35, %c0_36] : memref<1x128xf32, #tpu.memory_space<vmem>>, vector<1x128xf32>
    %61 = vector.broadcast %60 : vector<1x128xf32> to vector<256x128xf32>
    %62 = arith.addf %59, %61 : vector<256x128xf32>
    %c0_37 = arith.constant 0 : index
    %c0_38 = arith.constant 0 : index
    %63 = vector.load %arg12[%c0_37, %c0_38] : memref<256x128xf32, #tpu.memory_space<vmem>>, vector<256x128xf32>
    tpu.vector_store %arg12[%c0_37, %c0_38], %62 {strides = array<i32>} : memref<256x128xf32, #tpu.memory_space<vmem>>, vector<256x128xf32>,
    return
  }
  func.func @transform_0(%arg0: i32) -> (i32, i32) {
    %c0_i32 = arith.constant 0 : i32
    %c0_i32_0 = arith.constant 0 : i32
    return %arg0, %c0_i32 : i32, i32
  }
  func.func @transform_1(%arg0: i32) -> (i32, i32) {
    %c0_i32 = arith.constant 0 : i32
    %c0_i32_0 = arith.constant 0 : i32
    %c0_i32_1 = arith.constant 0 : i32
    return %c0_i32, %c0_i32_0 : i32, i32
  }
  func.func @transform_2(%arg0: i32) -> (i32, i32) {
    %c0_i32 = arith.constant 0 : i32
    %c0_i32_0 = arith.constant 0 : i32
    %c0_i32_1 = arith.constant 0 : i32
    return %c0_i32, %c0_i32_0 : i32, i32
  }
  func.func @transform_3(%arg0: i32) -> (i32, i32) {
    %c0_i32 = arith.constant 0 : i32
    %c0_i32_0 = arith.constant 0 : i32
    %c0_i32_1 = arith.constant 0 : i32
    return %c0_i32, %c0_i32_0 : i32, i32
  }
  func.func @transform_4(%arg0: i32) -> (i32, i32) {
    %c0_i32 = arith.constant 0 : i32
    %c0_i32_0 = arith.constant 0 : i32
    %c0_i32_1 = arith.constant 0 : i32
    return %c0_i32, %c0_i32_0 : i32, i32
  }
  func.func @transform_5(%arg0: i32) -> (i32, i32) {
    %c0_i32 = arith.constant 0 : i32
    %c0_i32_0 = arith.constant 0 : i32
    %c0_i32_1 = arith.constant 0 : i32
    return %c0_i32, %c0_i32_0 : i32, i32
  }
  func.func @transform_6(%arg0: i32) -> (i32, i32) {
    %c0_i32 = arith.constant 0 : i32
    %c0_i32_0 = arith.constant 0 : i32
    %c0_i32_1 = arith.constant 0 : i32
    return %c0_i32, %c0_i32_0 : i32, i32
  }
  func.func @transform_7(%arg0: i32) -> (i32, i32) {
    %c0_i32 = arith.constant 0 : i32
    %c0_i32_0 = arith.constant 0 : i32
    %c0_i32_1 = arith.constant 0 : i32
    return %c0_i32, %c0_i32_0 : i32, i32
  }
  func.func @transform_8(%arg0: i32) -> (i32, i32) {
    %c0_i32 = arith.constant 0 : i32
    %c0_i32_0 = arith.constant 0 : i32
    %c0_i32_1 = arith.constant 0 : i32
    return %c0_i32, %c0_i32_0 : i32, i32
  }
  func.func @transform_9(%arg0: i32) -> (i32, i32) {
    %c0_i32 = arith.constant 0 : i32
    %c0_i32_0 = arith.constant 0 : i32
    %c0_i32_1 = arith.constant 0 : i32
    return %c0_i32, %c0_i32_0 : i32, i32
  }
  func.func @transform_10(%arg0: i32) -> (i32, i32) {
    %c0_i32 = arith.constant 0 : i32
    %c0_i32_0 = arith.constant 0 : i32
    %c0_i32_1 = arith.constant 0 : i32
    return %c0_i32, %c0_i32_0 : i32, i32
  }
  func.func @transform_11(%arg0: i32) -> (i32, i32) {
    %c0_i32 = arith.constant 0 : i32
    %c0_i32_0 = arith.constant 0 : i32
    return %arg0, %c0_i32 : i32, i32
  }
}

</mosaic_0001>

<llo_original>
// kernel: tpu_custom_call.1
$region0: #{tpu_custom_call.1}
  #allocation0 [shape = 'u32[]', space=smem, size = 0x4, offset = 0x4, fixed_abs, tag = 'smem constant byte address 0x4 - core index']
  #allocation1 [shape = 'u32[144,128]{1,0:T(1,128)}', space=vmem, size = 0x12000, scoped, tag = 'internal scratch']
  %s0 = inlined_call_operand.vmem [shape: f32[512,8], index: 0, kind: input, shape index: {}]
  %s1 = inlined_call_operand.vmem [shape: bf16[8,128], index: 1, kind: input, shape index: {}]
  %s2 = inlined_call_operand.vmem [shape: f32[1,128], index: 2, kind: input, shape index: {}]
  %s3 = inlined_call_operand.vmem [shape: bf16[128,128], index: 3, kind: input, shape index: {}]
  %s4 = inlined_call_operand.vmem [shape: f32[1,128], index: 4, kind: input, shape index: {}]
  %s5 = inlined_call_operand.vmem [shape: bf16[128,128], index: 5, kind: input, shape index: {}]
  %s6 = inlined_call_operand.vmem [shape: f32[1,128], index: 6, kind: input, shape index: {}]
  %s7 = inlined_call_operand.vmem [shape: bf16[128,128], index: 7, kind: input, shape index: {}]
  %s8 = inlined_call_operand.vmem [shape: f32[1,128], index: 8, kind: input, shape index: {}]
  %s9 = inlined_call_operand.vmem [shape: bf16[128,128], index: 9, kind: input, shape index: {}]
  %s10 = inlined_call_operand.vmem [shape: f32[1,128], index: 10, kind: input, shape index: {}]
  %s11 = inlined_call_operand.hbm [shape: f32[512,128], index: 11, kind: output, shape index: {}]
  %s12 = sld [smem:[#allocation0]]
  $region77: #{tpu_custom_call.1} parent=0
    _
  %s14 = ssub.s32 1, %s12
  %s15 = scalar_select 0, %s14, %s12
  $region1: #{tpu_custom_call.1} parent=0
    #allocation2 [shape = 'u8[262144]{0}', space=vmem, size = 0x40000, scoped, tag = 'output window, operand 0']
    #allocation3 [shape = 's32[2]{0}', space=sflag, size = 0x8, scoped, tag = 'scoped memory for tpu_custom_call.1']
    %16 = vsyncpa [#allocation3], 0
    %s17 = scalar_lea.sflag [#allocation3], 1
    %18 = vsyncpa %s17, 0
    loop: start=0, step=1, limit=4
    $region2: #{tpu_custom_call.1} parent=1 // loop_pre_header
      _
    $region3: #{tpu_custom_call.1} parent=1 // loop_header
      %s20 = sphi 0, %s24
      %p21 = scmp.ge.s32.totalorder %s20, 4
      %s30 = sphi 0, %s32
      %s33 = sphi 0, %s30
      %s34 = sphi 0, %s33
      %s50 = sphi 0, %s34
      %s54 = sphi 0, %s54
      %s56 = sphi 0, %s54
      %s57 = sphi 0, %s56
      %s71 = sphi 0, %s57
      %s75 = sphi 0, %s75
      %s77 = sphi 0, %s75
      %s78 = sphi 0, %s77
      %s92 = sphi 0, %s78
      %s96 = sphi 0, %s96
      %s98 = sphi 0, %s96
      %s99 = sphi 0, %s98
      %s113 = sphi 0, %s99
      %s117 = sphi 0, %s117
      %s119 = sphi 0, %s117
      %s120 = sphi 0, %s119
      %s134 = sphi 0, %s120
      %s138 = sphi 0, %s138
      %s140 = sphi 0, %s138
      %s141 = sphi 0, %s140
      %s155 = sphi 0, %s141
      %s159 = sphi 0, %s159
      %s161 = sphi 0, %s159
      %s162 = sphi 0, %s161
      %s176 = sphi 0, %s162
      %s180 = sphi 0, %s180
      %s182 = sphi 0, %s180
      %s183 = sphi 0, %s182
      %s197 = sphi 0, %s183
      %s201 = sphi 0, %s201
      %s203 = sphi 0, %s201
      %s204 = sphi 0, %s203
      %s218 = sphi 0, %s204
      %s222 = sphi 0, %s222
      %s224 = sphi 0, %s222
      %s225 = sphi 0, %s224
      %s239 = sphi 0, %s225
      %s243 = sphi 0, %s243
      %s245 = sphi 0, %s243
      %s246 = sphi 0, %s245
      %s260 = sphi 0, %s246
      %s266 = sphi 0, %s268
      %s269 = sphi 0, %s266
      %s270 = sphi 0, %s269
      %s286 = sphi 0, %s270
    $region4: #{tpu_custom_call.1} parent=1 // loop_header_branch
      %23 = sbr.rel (%p21) target = $region8
    $region5: #{tpu_custom_call.1} parent=1 // loop_body
      %s25 = ssub.s32 %s20, 1
      %s26 = ssub.s32 %s20, 2
      %s27 = sadd.s32 %s20, 1
      %s28 = ssub.s32 %s20, %s27
      %p29 = scmp.eq.s32.totalorder %s28, 0
      %s31 = sadd.s32 %s30, 1
      %s32 = scalar_select %p29, %s30, %s31
      %p35 = pneg %p29
      %p36 = scmp.eq.s32.totalorder %s20, 1
      %p37 = por %p35, %p36
      %p38 = scmp.ne.s32.totalorder %s30, %s33
      %p39 = scmp.eq.s32.totalorder %s20, 0
      %p40 = por %p38, %p39
      %p41 = scmp.ne.s32.totalorder %s30, %s33
      %p42 = scmp.eq.s32.totalorder %s25, 1
      %p43 = por %p41, %p42
      %p44 = scmp.ne.s32.totalorder %s33, %s34
      %p45 = scmp.eq.s32.totalorder %s25, 0
      %p46 = por %p44, %p45
      %p47 = scmp.ne.s32.totalorder %s33, %s34
      %p48 = scmp.eq.s32.totalorder %s26, 1
      %p49 = por %p47, %p48
      %p51 = scmp.ne.s32.totalorder %s34, %s50
      %p52 = scmp.eq.s32.totalorder %s26, 0
      %p53 = por %p51, %p52
      %s55 = sadd.s32 %s54, 1
      %p58 = scmp.eq.s32.totalorder %s20, 1
      %p59 = scmp.ne.s32.totalorder %s54, %s56
      %p60 = scmp.eq.s32.totalorder %s20, 0
      %p61 = por %p59, %p60
      %p62 = scmp.ne.s32.totalorder %s54, %s56
      %p63 = scmp.eq.s32.totalorder %s25, 1
      %p64 = por %p62, %p63
      %p65 = scmp.ne.s32.totalorder %s56, %s57
      %p66 = scmp.eq.s32.totalorder %s25, 0
      %p67 = por %p65, %p66
      %p68 = scmp.ne.s32.totalorder %s56, %s57
      %p69 = scmp.eq.s32.totalorder %s26, 1
      %p70 = por %p68, %p69
      %p72 = scmp.ne.s32.totalorder %s57, %s71
      %p73 = scmp.eq.s32.totalorder %s26, 0
      %p74 = por %p72, %p73
      %s76 = sadd.s32 %s75, 1
      %p79 = scmp.eq.s32.totalorder %s20, 1
      %p80 = scmp.ne.s32.totalorder %s75, %s77
      %p81 = scmp.eq.s32.totalorder %s20, 0
      %p82 = por %p80, %p81
      %p83 = scmp.ne.s32.totalorder %s75, %s77
      %p84 = scmp.eq.s32.totalorder %s25, 1
      %p85 = por %p83, %p84
      %p86 = scmp.ne.s32.totalorder %s77, %s78
      %p87 = scmp.eq.s32.totalorder %s25, 0
      %p88 = por %p86, %p87
      %p89 = scmp.ne.s32.totalorder %s77, %s78
      %p90 = scmp.eq.s32.totalorder %s26, 1
      %p91 = por %p89, %p90
      %p93 = scmp.ne.s32.totalorder %s78, %s92
      %p94 = scmp.eq.s32.totalorder %s26, 0
      %p95 = por %p93, %p94
      %s97 = sadd.s32 %s96, 1
      %p100 = scmp.eq.s32.totalorder %s20, 1
      %p101 = scmp.ne.s32.totalorder %s96, %s98
      %p102 = scmp.eq.s32.totalorder %s20, 0
      %p103 = por %p101, %p102
      %p104 = scmp.ne.s32.totalorder %s96, %s98
      %p105 = scmp.eq.s32.totalorder %s25, 1
      %p106 = por %p104, %p105
      %p107 = scmp.ne.s32.totalorder %s98, %s99
      %p108 = scmp.eq.s32.totalorder %s25, 0
      %p109 = por %p107, %p108
      %p110 = scmp.ne.s32.totalorder %s98, %s99
      %p111 = scmp.eq.s32.totalorder %s26, 1
      %p112 = por %p110, %p111
      %p114 = scmp.ne.s32.totalorder %s99, %s113
      %p115 = scmp.eq.s32.totalorder %s26, 0
      %p116 = por %p114, %p115
      %s118 = sadd.s32 %s117, 1
      %p121 = scmp.eq.s32.totalorder %s20, 1
      %p122 = scmp.ne.s32.totalorder %s117, %s119
      %p123 = scmp.eq.s32.totalorder %s20, 0
      %p124 = por %p122, %p123
      %p125 = scmp.ne.s32.totalorder %s117, %s119
      %p126 = scmp.eq.s32.totalorder %s25, 1
      %p127 = por %p125, %p126
      %p128 = scmp.ne.s32.totalorder %s119, %s120
      %p129 = scmp.eq.s32.totalorder %s25, 0
      %p130 = por %p128, %p129
      %p131 = scmp.ne.s32.totalorder %s119, %s120
      %p132 = scmp.eq.s32.totalorder %s26, 1
      %p133 = por %p131, %p132
      %p135 = scmp.ne.s32.totalorder %s120, %s134
      %p136 = scmp.eq.s32.totalorder %s26, 0
      %p137 = por %p135, %p136
      %s139 = sadd.s32 %s138, 1
      %p142 = scmp.eq.s32.totalorder %s20, 1
      %p143 = scmp.ne.s32.totalorder %s138, %s140
      %p144 = scmp.eq.s32.totalorder %s20, 0
      %p145 = por %p143, %p144
      %p146 = scmp.ne.s32.totalorder %s138, %s140
      %p147 = scmp.eq.s32.totalorder %s25, 1
      %p148 = por %p146, %p147
      %p149 = scmp.ne.s32.totalorder %s140, %s141
      %p150 = scmp.eq.s32.totalorder %s25, 0
      %p151 = por %p149, %p150
      %p152 = scmp.ne.s32.totalorder %s140, %s141
      %p153 = scmp.eq.s32.totalorder %s26, 1
      %p154 = por %p152, %p153
      %p156 = scmp.ne.s32.totalorder %s141, %s155
      %p157 = scmp.eq.s32.totalorder %s26, 0
      %p158 = por %p156, %p157
      %s160 = sadd.s32 %s159, 1
      %p163 = scmp.eq.s32.totalorder %s20, 1
      %p164 = scmp.ne.s32.totalorder %s159, %s161
      %p165 = scmp.eq.s32.totalorder %s20, 0
      %p166 = por %p164, %p165
      %p167 = scmp.ne.s32.totalorder %s159, %s161
      %p168 = scmp.eq.s32.totalorder %s25, 1
      %p169 = por %p167, %p168
      %p170 = scmp.ne.s32.totalorder %s161, %s162
      %p171 = scmp.eq.s32.totalorder %s25, 0
      %p172 = por %p170, %p171
      %p173 = scmp.ne.s32.totalorder %s161, %s162
      %p174 = scmp.eq.s32.totalorder %s26, 1
      %p175 = por %p173, %p174
      %p177 = scmp.ne.s32.totalorder %s162, %s176
      %p178 = scmp.eq.s32.totalorder %s26, 0
      %p179 = por %p177, %p178
      %s181 = sadd.s32 %s180, 1
      %p184 = scmp.eq.s32.totalorder %s20, 1
      %p185 = scmp.ne.s32.totalorder %s180, %s182
      %p186 = scmp.eq.s32.totalorder %s20, 0
      %p187 = por %p185, %p186
      %p188 = scmp.ne.s32.totalorder %s180, %s182
      %p189 = scmp.eq.s32.totalorder %s25, 1
      %p190 = por %p188, %p189
      %p191 = scmp.ne.s32.totalorder %s182, %s183
      %p192 = scmp.eq.s32.totalorder %s25, 0
      %p193 = por %p191, %p192
      %p194 = scmp.ne.s32.totalorder %s182, %s183
      %p195 = scmp.eq.s32.totalorder %s26, 1
      %p196 = por %p194, %p195
      %p198 = scmp.ne.s32.totalorder %s183, %s197
      %p199 = scmp.eq.s32.totalorder %s26, 0
      %p200 = por %p198, %p199
      %s202 = sadd.s32 %s201, 1
      %p205 = scmp.eq.s32.totalorder %s20, 1
      %p206 = scmp.ne.s32.totalorder %s201, %s203
      %p207 = scmp.eq.s32.totalorder %s20, 0
      %p208 = por %p206, %p207
      %p209 = scmp.ne.s32.totalorder %s201, %s203
      %p210 = scmp.eq.s32.totalorder %s25, 1
      %p211 = por %p209, %p210
      %p212 = scmp.ne.s32.totalorder %s203, %s204
      %p213 = scmp.eq.s32.totalorder %s25, 0
      %p214 = por %p212, %p213
      %p215 = scmp.ne.s32.totalorder %s203, %s204
      %p216 = scmp.eq.s32.totalorder %s26, 1
      %p217 = por %p215, %p216
      %p219 = scmp.ne.s32.totalorder %s204, %s218
      %p220 = scmp.eq.s32.totalorder %s26, 0
      %p221 = por %p219, %p220
      %s223 = sadd.s32 %s222, 1
      %p226 = scmp.eq.s32.totalorder %s20, 1
      %p227 = scmp.ne.s32.totalorder %s222, %s224
      %p228 = scmp.eq.s32.totalorder %s20, 0
      %p229 = por %p227, %p228
      %p230 = scmp.ne.s32.totalorder %s222, %s224
      %p231 = scmp.eq.s32.totalorder %s25, 1
      %p232 = por %p230, %p231
      %p233 = scmp.ne.s32.totalorder %s224, %s225
      %p234 = scmp.eq.s32.totalorder %s25, 0
      %p235 = por %p233, %p234
      %p236 = scmp.ne.s32.totalorder %s224, %s225
      %p237 = scmp.eq.s32.totalorder %s26, 1
      %p238 = por %p236, %p237
      %p240 = scmp.ne.s32.totalorder %s225, %s239
      %p241 = scmp.eq.s32.totalorder %s26, 0
      %p242 = por %p240, %p241
      %s244 = sadd.s32 %s243, 1
      %p247 = scmp.eq.s32.totalorder %s20, 1
      %p248 = scmp.ne.s32.totalorder %s243, %s245
      %p249 = scmp.eq.s32.totalorder %s20, 0
      %p250 = por %p248, %p249
      %p251 = scmp.ne.s32.totalorder %s243, %s245
      %p252 = scmp.eq.s32.totalorder %s25, 1
      %p253 = por %p251, %p252
      %p254 = scmp.ne.s32.totalorder %s245, %s246
      %p255 = scmp.eq.s32.totalorder %s25, 0
      %p256 = por %p254, %p255
      %p257 = scmp.ne.s32.totalorder %s245, %s246
      %p258 = scmp.eq.s32.totalorder %s26, 1
      %p259 = por %p257, %p258
      %p261 = scmp.ne.s32.totalorder %s246, %s260
      %p262 = scmp.eq.s32.totalorder %s26, 0
      %p263 = por %p261, %p262
      %s264 = ssub.s32 %s20, %s27
      %p265 = scmp.eq.s32.totalorder %s264, 0
      %s267 = sadd.s32 %s266, 1
      %s268 = scalar_select %p265, %s266, %s267
      %p271 = pneg %p265
      %p272 = scmp.eq.s32.totalorder %s20, 1
      %p273 = por %p271, %p272
      %p274 = scmp.ne.s32.totalorder %s266, %s269
      %p275 = scmp.eq.s32.totalorder %s20, 0
      %p276 = por %p274, %p275
      %p277 = scmp.ne.s32.totalorder %s266, %s269
      %p278 = scmp.eq.s32.totalorder %s25, 1
      %p279 = por %p277, %p278
      %p280 = scmp.ne.s32.totalorder %s269, %s270
      %p281 = scmp.eq.s32.totalorder %s25, 0
      %p282 = por %p280, %p281
      %p283 = scmp.ne.s32.totalorder %s269, %s270
      %p284 = scmp.eq.s32.totalorder %s26, 1
      %p285 = por %p283, %p284
      %p287 = scmp.ne.s32.totalorder %s270, %s286
      %p288 = scmp.eq.s32.totalorder %s26, 0
      %p289 = por %p287, %p288
      %p290 = scmp.le.s32.totalorder 1, %s20
      %p291 = scmp.lt.s32.totalorder %s20, 3
      %p292 = pnand %p290, %p291
      %p293 = pneg %p292
      // Predicated region
      $region9: #{tpu_custom_call.1} parent=5 // pred_check
        _
      $region10: #{tpu_custom_call.1} parent=5 // pred_check_branch
        %295 = sbr.rel (%p292) target = $region12
      $region11: #{tpu_custom_call.1} parent=5 // pred_region
        %s296 = ssub.s32 %s20, 1
        // Predicated region
        $region13: #{tpu_custom_call.1} parent=11 // pred_check
          %p297 = pneg %p67
        $region14: #{tpu_custom_call.1} parent=11 // pred_check_branch
          %299 = sbr.rel (%p297) target = $region16
        $region15: #{tpu_custom_call.1} parent=11 // pred_region
          _
        $region16: #{tpu_custom_call.1} parent=11 // pred_fallthru
          _
        // Predicated region
        $region17: #{tpu_custom_call.1} parent=11 // pred_check
          %p300 = pneg %p88
        $region18: #{tpu_custom_call.1} parent=11 // pred_check_branch
          %302 = sbr.rel (%p300) target = $region20
        $region19: #{tpu_custom_call.1} parent=11 // pred_region
          _
        $region20: #{tpu_custom_call.1} parent=11 // pred_fallthru
          _
        // Predicated region
        $region21: #{tpu_custom_call.1} parent=11 // pred_check
          %p303 = pneg %p109
        $region22: #{tpu_custom_call.1} parent=11 // pred_check_branch
          %305 = sbr.rel (%p303) target = $region24
        $region23: #{tpu_custom_call.1} parent=11 // pred_region
          _
        $region24: #{tpu_custom_call.1} parent=11 // pred_fallthru
          _
        // Predicated region
        $region25: #{tpu_custom_call.1} parent=11 // pred_check
          %p306 = pneg %p130
        $region26: #{tpu_custom_call.1} parent=11 // pred_check_branch
          %308 = sbr.rel (%p306) target = $region28
        $region27: #{tpu_custom_call.1} parent=11 // pred_region
          _
        $region28: #{tpu_custom_call.1} parent=11 // pred_fallthru
          _
        // Predicated region
        $region29: #{tpu_custom_call.1} parent=11 // pred_check
          %p309 = pneg %p151
        $region30: #{tpu_custom_call.1} parent=11 // pred_check_branch
          %311 = sbr.rel (%p309) target = $region32
        $region31: #{tpu_custom_call.1} parent=11 // pred_region
          _
        $region32: #{tpu_custom_call.1} parent=11 // pred_fallthru
          _
        // Predicated region
        $region33: #{tpu_custom_call.1} parent=11 // pred_check
          %p312 = pneg %p172
        $region34: #{tpu_custom_call.1} parent=11 // pred_check_branch
          %314 = sbr.rel (%p312) target = $region36
        $region35: #{tpu_custom_call.1} parent=11 // pred_region
          _
        $region36: #{tpu_custom_call.1} parent=11 // pred_fallthru
          _
        // Predicated region
        $region37: #{tpu_custom_call.1} parent=11 // pred_check
          %p315 = pneg %p193
        $region38: #{tpu_custom_call.1} parent=11 // pred_check_branch
          %317 = sbr.rel (%p315) target = $region40
        $region39: #{tpu_custom_call.1} parent=11 // pred_region
          _
        $region40: #{tpu_custom_call.1} parent=11 // pred_fallthru
          _
        // Predicated region
        $region41: #{tpu_custom_call.1} parent=11 // pred_check
          %p318 = pneg %p214
        $region42: #{tpu_custom_call.1} parent=11 // pred_check_branch
          %320 = sbr.rel (%p318) target = $region44
        $region43: #{tpu_custom_call.1} parent=11 // pred_region
          _
        $region44: #{tpu_custom_call.1} parent=11 // pred_fallthru
          _
        // Predicated region
        $region45: #{tpu_custom_call.1} parent=11 // pred_check
          %p321 = pneg %p235
        $region46: #{tpu_custom_call.1} parent=11 // pred_check_branch
          %323 = sbr.rel (%p321) target = $region48
        $region47: #{tpu_custom_call.1} parent=11 // pred_region
          _
        $region48: #{tpu_custom_call.1} parent=11 // pred_fallthru
          _
        // Predicated region
        $region49: #{tpu_custom_call.1} parent=11 // pred_check
          %p324 = pneg %p256
        $region50: #{tpu_custom_call.1} parent=11 // pred_check_branch
          %326 = sbr.rel (%p324) target = $region52
        $region51: #{tpu_custom_call.1} parent=11 // pred_region
          _
        $region52: #{tpu_custom_call.1} parent=11 // pred_fallthru
          _
      $region12: #{tpu_custom_call.1} parent=5 // pred_fallthru
        _
      %p327 = scmp.lt.s32.totalorder %s20, 2
      // Predicated region
      $region53: #{tpu_custom_call.1} parent=5 // pred_check
        %p328 = pneg %p327
      $region54: #{tpu_custom_call.1} parent=5 // pred_check_branch
        %330 = sbr.rel (%p328) target = $region56
      $region55: #{tpu_custom_call.1} parent=5 // pred_region
        // Predicated region
        $region57: #{tpu_custom_call.1} parent=55 // pred_check
          %p331 = pneg %p40
        $region58: #{tpu_custom_call.1} parent=55 // pred_check_branch
          %333 = sbr.rel (%p331) target = $region60
        $region59: #{tpu_custom_call.1} parent=55 // pred_region
          %s334 = smul.u32 32, %s20
          %p335 = scmp.lt.s32.totalorder %s334, 63
          %s336 = scalar_select %p335, %s334, 63
          %s337 = smul.addr %s336, 8
          %s338 = scalar_lea.vmem %s0, %s337
          %s339 = smul.u32 32, %s20
        $region60: #{tpu_custom_call.1} parent=55 // pred_fallthru
          _
      $region56: #{tpu_custom_call.1} parent=5 // pred_fallthru
        _
      %p340 = scmp.le.s32.totalorder 1, %s20
      %p341 = scmp.lt.s32.totalorder %s20, 3
      %p342 = pnand %p340, %p341
      %p343 = pneg %p342
      // Predicated region
      $region61: #{tpu_custom_call.1} parent=5 // pred_check
        _
      $region62: #{tpu_custom_call.1} parent=5 // pred_check_branch
        %345 = sbr.rel (%p342) target = $region64
      $region63: #{tpu_custom_call.1} parent=5 // pred_region
        %s346 = ssub.s32 %s20, 1
        %s347 = smul.u32 32, %s25
        %p348 = scmp.lt.s32.totalorder %s347, 63
        %s349 = scalar_select %p348, %s347, 63
        %s350 = smul.addr %s349, 8
        %s351 = scalar_lea.vmem %s0, %s350
        %p352 = pneg %p46
        %p353 = pneg %p43
        %p354 = pneg %p67
        %p355 = pneg %p64
        %p356 = pneg %p88
        %p357 = pneg %p85
        %p358 = pneg %p109
        %p359 = pneg %p106
        %p360 = pneg %p130
        %p361 = pneg %p127
        %p362 = pneg %p151
        %p363 = pneg %p148
        %p364 = pneg %p172
        %p365 = pneg %p169
        %p366 = pneg %p193
        %p367 = pneg %p190
        %p368 = pneg %p214
        %p369 = pneg %p211
        %p370 = pneg %p235
        %p371 = pneg %p232
        %p372 = pneg %p256
        %p373 = pneg %p253
        %p374 = pneg %p282
        %p375 = pneg %p279
        %s376 = sand.u32 %s269, 1
        %s377 = scalar_lea.sflag [#allocation3], %s376
        %s378 = sand.u32 %s269, 1
        %s379 = smul.addr %s378, 256
        %s380 = scalar_lea.vmem [#allocation2], %s379
        %s381 = smul.u32 32, %s25
        %p382 = scmp.lt.s32.totalorder %s381, 63
        %s383 = scalar_select %p382, %s381, 63
        %s384 = smul.addr %s383, 8
        %s385 = scalar_lea.vmem %s0, %s384
        %s386 = smul.u32 32, %s25
        %s387 = smul.u32 32, %s25
        %v389 = vld [vmem:[%s385] sm:$0xff]
        %v390 = vld [vmem:[%s385 + $0x8] sm:$0xff]
        %v391 = vld [vmem:[%s385 + $0x10] sm:$0xff]
        %v392 = vld [vmem:[%s385 + $0x18] sm:$0xff]
        %v393 = vld [vmem:[%s385 + $0x20] sm:$0xff]
        %v394 = vld [vmem:[%s385 + $0x28] sm:$0xff]
        %v395 = vld [vmem:[%s385 + $0x30] sm:$0xff]
        %v396 = vld [vmem:[%s385 + $0x38] sm:$0xff]
        %v397 = vld [vmem:[%s385 + $0x40] sm:$0xff]
        %v398 = vld [vmem:[%s385 + $0x48] sm:$0xff]
        %v399 = vld [vmem:[%s385 + $0x50] sm:$0xff]
        %v400 = vld [vmem:[%s385 + $0x58] sm:$0xff]
        %v401 = vld [vmem:[%s385 + $0x60] sm:$0xff]
        %v402 = vld [vmem:[%s385 + $0x68] sm:$0xff]
        %v403 = vld [vmem:[%s385 + $0x70] sm:$0xff]
        %v404 = vld [vmem:[%s385 + $0x78] sm:$0xff]
        %v405 = vld [vmem:[%s385 + $0x80] sm:$0xff]
        %v406 = vld [vmem:[%s385 + $0x88] sm:$0xff]
        %v407 = vld [vmem:[%s385 + $0x90] sm:$0xff]
        %v408 = vld [vmem:[%s385 + $0x98] sm:$0xff]
        %v409 = vld [vmem:[%s385 + $0xa0] sm:$0xff]
        %v410 = vld [vmem:[%s385 + $0xa8] sm:$0xff]
        %v411 = vld [vmem:[%s385 + $0xb0] sm:$0xff]
        %v412 = vld [vmem:[%s385 + $0xb8] sm:$0xff]
        %v413 = vld [vmem:[%s385 + $0xc0] sm:$0xff]
        %v414 = vld [vmem:[%s385 + $0xc8] sm:$0xff]
        %v415 = vld [vmem:[%s385 + $0xd0] sm:$0xff]
        %v416 = vld [vmem:[%s385 + $0xd8] sm:$0xff]
        %v417 = vld [vmem:[%s385 + $0xe0] sm:$0xff]
        %v418 = vld [vmem:[%s385 + $0xe8] sm:$0xff]
        %v419 = vld [vmem:[%s385 + $0xf0] sm:$0xff]
        %v420 = vld [vmem:[%s385 + $0xf8] sm:$0xff]
        %v421 = vpack.c.bf16 %v390, %v389
        %v422 = vpack.c.bf16 %v392, %v391
        %v423 = vpack.c.bf16 %v394, %v393
        %v424 = vpack.c.bf16 %v396, %v395
        %v425 = vpack.c.bf16 %v398, %v397
        %v426 = vpack.c.bf16 %v400, %v399
        %v427 = vpack.c.bf16 %v402, %v401
        %v428 = vpack.c.bf16 %v404, %v403
        %v429 = vpack.c.bf16 %v406, %v405
        %v430 = vpack.c.bf16 %v408, %v407
        %v431 = vpack.c.bf16 %v410, %v409
        %v432 = vpack.c.bf16 %v412, %v411
        %v433 = vpack.c.bf16 %v414, %v413
        %v434 = vpack.c.bf16 %v416, %v415
        %v435 = vpack.c.bf16 %v418, %v417
        %v436 = vpack.c.bf16 %v420, %v419
        %v437 = vld [vmem:[%s1] sm:$0xf]
        %v438 = vld [vmem:[%s2] sm:$0x1]
        %v440 = vlaneseq
        %v441 = vshrl.u32 %v440, 7
        %v442 = vsub.s32 0, %v441
        %v443 = vrot.slane %v438, %v442
        %vm445 = vcmask 64512
        %v447 = vsel %vm445, %v421, 0
        %v450 = vsel %vm445, %v422, 0
        %v453 = vsel %vm445, %v423, 0
        %v456 = vsel %vm445, %v424, 0
        %v459 = vsel %vm445, %v425, 0
        %v462 = vsel %vm445, %v426, 0
        %v465 = vsel %vm445, %v427, 0
        %v468 = vsel %vm445, %v428, 0
        %v471 = vsel %vm445, %v429, 0
        %v474 = vsel %vm445, %v430, 0
        %v477 = vsel %vm445, %v431, 0
        %v480 = vsel %vm445, %v432, 0
        %v483 = vsel %vm445, %v433, 0
        %v486 = vsel %vm445, %v434, 0
        %v489 = vsel %vm445, %v435, 0
        %v492 = vsel %vm445, %v436, 0
        %vm494 = vcmask 1043456
        %v496 = vsel %vm494, %v437, 0
        %498 = vmatprep.subr.bf16.mxu0 0
        %499 = vmatpush1.bf16.msra.mxu0 0
        %500 = vmatprep.subr.bf16.mxu0 0
        %501 = vmatpush1.bf16.msra.mxu0 0
        %502 = vmatprep.subr.bf16.mxu0 0
        %503 = vmatpush1.bf16.msra.mxu0 0
        %504 = vmatprep.subr.bf16.mxu0 0
        %505 = vmatpush1.bf16.msra.mxu0 0
        %506 = vmatprep.subr.bf16.mxu0 0
        %507 = vmatpush1.bf16.msra.mxu0 0
        %508 = vmatprep.subr.bf16.mxu0 0
        %509 = vmatpush1.bf16.msra.mxu0 0
        %510 = vmatprep.subr.bf16.mxu0 0
        %511 = vmatpush1.bf16.msra.mxu0 0
        %512 = vmatprep.subr.bf16.mxu0 0
        %513 = vmatpush1.bf16.msra.mxu0 %v496
        %514 = vmatprep.subr.bf16.mxu0 0
        %515 = vmatpush2.bf16.msra.mxu0 0
        %516 = vmatprep.subr.bf16.mxu0 0
        %517 = vmatpush2.bf16.msra.mxu0 0
        %518 = vmatprep.subr.bf16.mxu0 0
        %519 = vmatpush2.bf16.msra.mxu0 0
        %520 = vmatprep.subr.bf16.mxu0 0
        %521 = vmatpush2.bf16.msra.mxu0 0
        %522 = vmatprep.subr.bf16.mxu0 0
        %523 = vmatpush2.bf16.msra.mxu0 0
        %524 = vmatprep.subr.bf16.mxu0 0
        %525 = vmatpush2.bf16.msra.mxu0 0
        %526 = vmatprep.subr.bf16.mxu0 0
        %527 = vmatpush2.bf16.msra.mxu0 0
        %528 = vmatprep.subr.bf16.mxu0 0
        %529 = vmatpush2.bf16.msra.mxu0 0
        %530 = vmatprep.mubr.bf16.mxu0 0
        %531 = vmatmul.mubr.bf16.gmra.mxu0 %v447
        %v532 = vpop.f32.mrf.mxu0
        %v533 = vadd.f32 %v443, %v532
        %v534 = vpop.f32.mrf.mxu0
        %v535 = vpop.f32.mrf.mxu0
        %v536 = vadd.f32 %v443, %v535
        %v537 = vpop.f32.mrf.mxu0
        %538 = vmatprep.mubr.bf16.mxu0 0
        %539 = vmatmul.mubr.bf16.gmra.mxu0 %v450
        %v540 = vpop.f32.mrf.mxu0
        %v541 = vadd.f32 %v443, %v540
        %v542 = vpop.f32.mrf.mxu0
        %v543 = vpop.f32.mrf.mxu0
        %v544 = vadd.f32 %v443, %v543
        %v545 = vpop.f32.mrf.mxu0
        %546 = vmatprep.mubr.bf16.mxu0 0
        %547 = vmatmul.mubr.bf16.gmra.mxu0 %v453
        %v548 = vpop.f32.mrf.mxu0
        %v549 = vadd.f32 %v443, %v548
        %v550 = vpop.f32.mrf.mxu0
        %v551 = vpop.f32.mrf.mxu0
        %v552 = vadd.f32 %v443, %v551
        %v553 = vpop.f32.mrf.mxu0
        %554 = vmatprep.mubr.bf16.mxu0 0
        %555 = vmatmul.mubr.bf16.gmra.mxu0 %v456
        %v556 = vpop.f32.mrf.mxu0
        %v557 = vadd.f32 %v443, %v556
        %v558 = vpop.f32.mrf.mxu0
        %v559 = vpop.f32.mrf.mxu0
        %v560 = vadd.f32 %v443, %v559
        %v561 = vpop.f32.mrf.mxu0
        %562 = vmatprep.mubr.bf16.mxu0 0
        %563 = vmatmul.mubr.bf16.gmra.mxu0 %v459
        %v564 = vpop.f32.mrf.mxu0
        %v565 = vadd.f32 %v443, %v564
        %v566 = vpop.f32.mrf.mxu0
        %v567 = vpop.f32.mrf.mxu0
        %v568 = vadd.f32 %v443, %v567
        %v569 = vpop.f32.mrf.mxu0
        %570 = vmatprep.mubr.bf16.mxu0 0
        %571 = vmatmul.mubr.bf16.gmra.mxu0 %v462
        %v572 = vpop.f32.mrf.mxu0
        %v573 = vadd.f32 %v443, %v572
        %v574 = vpop.f32.mrf.mxu0
        %v575 = vpop.f32.mrf.mxu0
        %v576 = vadd.f32 %v443, %v575
        %v577 = vpop.f32.mrf.mxu0
        %578 = vmatprep.mubr.bf16.mxu0 0
        %579 = vmatmul.mubr.bf16.gmra.mxu0 %v465
        %v580 = vpop.f32.mrf.mxu0
        %v581 = vadd.f32 %v443, %v580
        %v582 = vpop.f32.mrf.mxu0
        %v583 = vpop.f32.mrf.mxu0
        %v584 = vadd.f32 %v443, %v583
        %v585 = vpop.f32.mrf.mxu0
        %586 = vmatprep.mubr.bf16.mxu0 0
        %587 = vmatmul.mubr.bf16.gmra.mxu0 %v468
        %v588 = vpop.f32.mrf.mxu0
        %v589 = vadd.f32 %v443, %v588
        %v590 = vpop.f32.mrf.mxu0
        %v591 = vpop.f32.mrf.mxu0
        %v592 = vadd.f32 %v443, %v591
        %v593 = vpop.f32.mrf.mxu0
        %594 = vmatprep.mubr.bf16.mxu0 0
        %595 = vmatmul.mubr.bf16.gmra.mxu0 %v471
        %v596 = vpop.f32.mrf.mxu0
        %v597 = vadd.f32 %v443, %v596
        %v598 = vpop.f32.mrf.mxu0
        %v599 = vpop.f32.mrf.mxu0
        %v600 = vadd.f32 %v443, %v599
        %v601 = vpop.f32.mrf.mxu0
        %602 = vmatprep.mubr.bf16.mxu0 0
        %603 = vmatmul.mubr.bf16.gmra.mxu0 %v474
        %v604 = vpop.f32.mrf.mxu0
        %v605 = vadd.f32 %v443, %v604
        %v606 = vpop.f32.mrf.mxu0
        %v607 = vpop.f32.mrf.mxu0
        %v608 = vadd.f32 %v443, %v607
        %v609 = vpop.f32.mrf.mxu0
        %610 = vmatprep.mubr.bf16.mxu0 0
        %611 = vmatmul.mubr.bf16.gmra.mxu0 %v477
        %v612 = vpop.f32.mrf.mxu0
        %v613 = vadd.f32 %v443, %v612
        %v614 = vpop.f32.mrf.mxu0
        %v615 = vpop.f32.mrf.mxu0
        %v616 = vadd.f32 %v443, %v615
        %v617 = vpop.f32.mrf.mxu0
        %618 = vmatprep.mubr.bf16.mxu0 0
        %619 = vmatmul.mubr.bf16.gmra.mxu0 %v480
        %v620 = vpop.f32.mrf.mxu0
        %v621 = vadd.f32 %v443, %v620
        %v622 = vpop.f32.mrf.mxu0
        %v623 = vpop.f32.mrf.mxu0
        %v624 = vadd.f32 %v443, %v623
        %v625 = vpop.f32.mrf.mxu0
        %626 = vmatprep.mubr.bf16.mxu0 0
        %627 = vmatmul.mubr.bf16.gmra.mxu0 %v483
        %v628 = vpop.f32.mrf.mxu0
        %v629 = vadd.f32 %v443, %v628
        %v630 = vpop.f32.mrf.mxu0
        %v631 = vpop.f32.mrf.mxu0
        %v632 = vadd.f32 %v443, %v631
        %v633 = vpop.f32.mrf.mxu0
        %634 = vmatprep.mubr.bf16.mxu0 0
        %635 = vmatmul.mubr.bf16.gmra.mxu0 %v486
        %v636 = vpop.f32.mrf.mxu0
        %v637 = vadd.f32 %v443, %v636
        %v638 = vpop.f32.mrf.mxu0
        %v639 = vpop.f32.mrf.mxu0
        %v640 = vadd.f32 %v443, %v639
        %v641 = vpop.f32.mrf.mxu0
        %642 = vmatprep.mubr.bf16.mxu0 0
        %643 = vmatmul.mubr.bf16.gmra.mxu0 %v489
        %v644 = vpop.f32.mrf.mxu0
        %v645 = vadd.f32 %v443, %v644
        %v646 = vpop.f32.mrf.mxu0
        %v647 = vpop.f32.mrf.mxu0
        %v648 = vadd.f32 %v443, %v647
        %v649 = vpop.f32.mrf.mxu0
        %650 = vmatprep.mubr.bf16.mxu0 0
        %651 = vmatmul.mubr.bf16.gmra.mxu0 %v492
        %v652 = vpop.f32.mrf.mxu0
        %v653 = vadd.f32 %v443, %v652
        %v654 = vpop.f32.mrf.mxu0
        %v655 = vpop.f32.mrf.mxu0
        %v656 = vadd.f32 %v443, %v655
        %v657 = vpop.f32.mrf.mxu0
        %658 = vdwg.mxu0
        %v659 = vmul.f32 %v533, 0.5
        %v660 = vmul.f32 %v536, 0.5
        %v661 = vmul.f32 %v541, 0.5
        %v662 = vmul.f32 %v544, 0.5
        %v663 = vmul.f32 %v549, 0.5
        %v664 = vmul.f32 %v552, 0.5
        %v665 = vmul.f32 %v557, 0.5
        %v666 = vmul.f32 %v560, 0.5
        %v667 = vmul.f32 %v565, 0.5
        %v668 = vmul.f32 %v568, 0.5
        %v669 = vmul.f32 %v573, 0.5
        %v670 = vmul.f32 %v576, 0.5
        %v671 = vmul.f32 %v581, 0.5
        %v672 = vmul.f32 %v584, 0.5
        %v673 = vmul.f32 %v589, 0.5
        %v674 = vmul.f32 %v592, 0.5
        %v675 = vmul.f32 %v597, 0.5
        %v676 = vmul.f32 %v600, 0.5
        %v677 = vmul.f32 %v605, 0.5
        %v678 = vmul.f32 %v608, 0.5
        %v679 = vmul.f32 %v613, 0.5
        %v680 = vmul.f32 %v616, 0.5
        %v681 = vmul.f32 %v621, 0.5
        %v682 = vmul.f32 %v624, 0.5
        %v683 = vmul.f32 %v629, 0.5
        %v684 = vmul.f32 %v632, 0.5
        %v685 = vmul.f32 %v637, 0.5
        %v686 = vmul.f32 %v640, 0.5
        %v687 = vmul.f32 %v645, 0.5
        %v688 = vmul.f32 %v648, 0.5
        %v689 = vmul.f32 %v653, 0.5
        %v690 = vmul.f32 %v656, 0.5
        %v691 = vtanh.pop %v659
        %v692 = vtanh.pop %v660
        %v693 = vtanh.pop %v661
        %v694 = vtanh.pop %v662
        %v695 = vtanh.pop %v663
        %v696 = vtanh.pop %v664
        %v697 = vtanh.pop %v665
        %v698 = vtanh.pop %v666
        %v699 = vtanh.pop %v667
        %v700 = vtanh.pop %v668
        %v701 = vtanh.pop %v669
        %v702 = vtanh.pop %v670
        %v703 = vtanh.pop %v671
        %v704 = vtanh.pop %v672
        %v705 = vtanh.pop %v673
        %v706 = vtanh.pop %v674
        %v707 = vtanh.pop %v675
        %v708 = vtanh.pop %v676
        %v709 = vtanh.pop %v677
        %v710 = vtanh.pop %v678
        %v711 = vtanh.pop %v679
        %v712 = vtanh.pop %v680
        %v713 = vtanh.pop %v681
        %v714 = vtanh.pop %v682
        %v715 = vtanh.pop %v683
        %v716 = vtanh.pop %v684
        %v717 = vtanh.pop %v685
        %v718 = vtanh.pop %v686
        %v719 = vtanh.pop %v687
        %v720 = vtanh.pop %v688
        %v721 = vtanh.pop %v689
        %v722 = vtanh.pop %v690
        %v723 = vmul.f32 %v691, 0.5
        %v724 = vmul.f32 %v692, 0.5
        %v725 = vmul.f32 %v693, 0.5
        %v726 = vmul.f32 %v694, 0.5
        %v727 = vmul.f32 %v695, 0.5
        %v728 = vmul.f32 %v696, 0.5
        %v729 = vmul.f32 %v697, 0.5
        %v730 = vmul.f32 %v698, 0.5
        %v731 = vmul.f32 %v699, 0.5
        %v732 = vmul.f32 %v700, 0.5
        %v733 = vmul.f32 %v701, 0.5
        %v734 = vmul.f32 %v702, 0.5
        %v735 = vmul.f32 %v703, 0.5
        %v736 = vmul.f32 %v704, 0.5
        %v737 = vmul.f32 %v705, 0.5
        %v738 = vmul.f32 %v706, 0.5
        %v739 = vmul.f32 %v707, 0.5
        %v740 = vmul.f32 %v708, 0.5
        %v741 = vmul.f32 %v709, 0.5
        %v742 = vmul.f32 %v710, 0.5
        %v743 = vmul.f32 %v711, 0.5
        %v744 = vmul.f32 %v712, 0.5
        %v745 = vmul.f32 %v713, 0.5
        %v746 = vmul.f32 %v714, 0.5
        %v747 = vmul.f32 %v715, 0.5
        %v748 = vmul.f32 %v716, 0.5
        %v749 = vmul.f32 %v717, 0.5
        %v750 = vmul.f32 %v718, 0.5
        %v751 = vmul.f32 %v719, 0.5
        %v752 = vmul.f32 %v720, 0.5
        %v753 = vmul.f32 %v721, 0.5
        %v754 = vmul.f32 %v722, 0.5
        %v755 = vadd.f32 %v723, 0.5
        %v756 = vadd.f32 %v724, 0.5
        %v757 = vadd.f32 %v725, 0.5
        %v758 = vadd.f32 %v726, 0.5
        %v759 = vadd.f32 %v727, 0.5
        %v760 = vadd.f32 %v728, 0.5
        %v761 = vadd.f32 %v729, 0.5
        %v762 = vadd.f32 %v730, 0.5
        %v763 = vadd.f32 %v731, 0.5
        %v764 = vadd.f32 %v732, 0.5
        %v765 = vadd.f32 %v733, 0.5
        %v766 = vadd.f32 %v734, 0.5
        %v767 = vadd.f32 %v735, 0.5
        %v768 = vadd.f32 %v736, 0.5
        %v769 = vadd.f32 %v737, 0.5
        %v770 = vadd.f32 %v738, 0.5
        %v771 = vadd.f32 %v739, 0.5
        %v772 = vadd.f32 %v740, 0.5
        %v773 = vadd.f32 %v741, 0.5
        %v774 = vadd.f32 %v742, 0.5
        %v775 = vadd.f32 %v743, 0.5
        %v776 = vadd.f32 %v744, 0.5
        %v777 = vadd.f32 %v745, 0.5
        %v778 = vadd.f32 %v746, 0.5
        %v779 = vadd.f32 %v747, 0.5
        %v780 = vadd.f32 %v748, 0.5
        %v781 = vadd.f32 %v749, 0.5
        %v782 = vadd.f32 %v750, 0.5
        %v783 = vadd.f32 %v751, 0.5
        %v784 = vadd.f32 %v752, 0.5
        %v785 = vadd.f32 %v753, 0.5
        %v786 = vadd.f32 %v754, 0.5
        %v787 = vmul.f32 %v533, %v755
        %v788 = vmul.f32 %v536, %v756
        %v789 = vmul.f32 %v541, %v757
        %v790 = vmul.f32 %v544, %v758
        %v791 = vmul.f32 %v549, %v759
        %v792 = vmul.f32 %v552, %v760
        %v793 = vmul.f32 %v557, %v761
        %v794 = vmul.f32 %v560, %v762
        %v795 = vmul.f32 %v565, %v763
        %v796 = vmul.f32 %v568, %v764
        %v797 = vmul.f32 %v573, %v765
        %v798 = vmul.f32 %v576, %v766
        %v799 = vmul.f32 %v581, %v767
        %v800 = vmul.f32 %v584, %v768
        %v801 = vmul.f32 %v589, %v769
        %v802 = vmul.f32 %v592, %v770
        %v803 = vmul.f32 %v597, %v771
        %v804 = vmul.f32 %v600, %v772
        %v805 = vmul.f32 %v605, %v773
        %v806 = vmul.f32 %v608, %v774
        %v807 = vmul.f32 %v613, %v775
        %v808 = vmul.f32 %v616, %v776
        %v809 = vmul.f32 %v621, %v777
        %v810 = vmul.f32 %v624, %v778
        %v811 = vmul.f32 %v629, %v779
        %v812 = vmul.f32 %v632, %v780
        %v813 = vmul.f32 %v637, %v781
        %v814 = vmul.f32 %v640, %v782
        %v815 = vmul.f32 %v645, %v783
        %v816 = vmul.f32 %v648, %v784
        %v817 = vmul.f32 %v653, %v785
        %v818 = vmul.f32 %v656, %v786
        %v819 = vpack.c.bf16 %v788, %v787
        %v820 = vpack.c.bf16 %v790, %v789
        %v821 = vpack.c.bf16 %v792, %v791
        %v822 = vpack.c.bf16 %v794, %v793
        %v823 = vpack.c.bf16 %v796, %v795
        %v824 = vpack.c.bf16 %v798, %v797
        %v825 = vpack.c.bf16 %v800, %v799
        %v826 = vpack.c.bf16 %v802, %v801
        %v827 = vpack.c.bf16 %v804, %v803
        %v828 = vpack.c.bf16 %v806, %v805
        %v829 = vpack.c.bf16 %v808, %v807
        %v830 = vpack.c.bf16 %v810, %v809
        %v831 = vpack.c.bf16 %v812, %v811
        %v832 = vpack.c.bf16 %v814, %v813
        %v833 = vpack.c.bf16 %v816, %v815
        %v834 = vpack.c.bf16 %v818, %v817
        %v835 = vld [vmem:[%s3] sm:$0xf]
        %v836 = vld [vmem:[%s3 + $0x4] sm:$0xf]
        %v837 = vld [vmem:[%s3 + $0x8] sm:$0xf]
        %v838 = vld [vmem:[%s3 + $0xc] sm:$0xf]
        %v839 = vld [vmem:[%s3 + $0x10] sm:$0xf]
        %v840 = vld [vmem:[%s3 + $0x14] sm:$0xf]
        %v841 = vld [vmem:[%s3 + $0x18] sm:$0xf]
        %v842 = vld [vmem:[%s3 + $0x1c] sm:$0xf]
        %v843 = vld [vmem:[%s3 + $0x20] sm:$0xf]
        %v844 = vld [vmem:[%s3 + $0x24] sm:$0xf]
        %v845 = vld [vmem:[%s3 + $0x28] sm:$0xf]
        %v846 = vld [vmem:[%s3 + $0x2c] sm:$0xf]
        %v847 = vld [vmem:[%s3 + $0x30] sm:$0xf]
        %v848 = vld [vmem:[%s3 + $0x34] sm:$0xf]
        %v849 = vld [vmem:[%s3 + $0x38] sm:$0xf]
        %v850 = vld [vmem:[%s3 + $0x3c] sm:$0xf]
        %v851 = vld [vmem:[%s4] sm:$0x1]
        %v853 = vlaneseq
        %v854 = vshrl.u32 %v853, 7
        %v855 = vsub.s32 0, %v854
        %v856 = vrot.slane %v851, %v855
        %v874 = vunpack.c.l.b16 %v835
        %v875 = vunpack.c.l.b16 %v836
        %v876 = vunpack.c.l.b16 %v837
        %v877 = vunpack.c.l.b16 %v838
        %v878 = vunpack.c.l.b16 %v839
        %v879 = vunpack.c.l.b16 %v840
        %v880 = vunpack.c.l.b16 %v841
        %v881 = vunpack.c.l.b16 %v842
        %v882 = vunpack.c.l.b16 %v843
        %v883 = vunpack.c.l.b16 %v844
        %v884 = vunpack.c.l.b16 %v845
        %v885 = vunpack.c.l.b16 %v846
        %v886 = vunpack.c.l.b16 %v847
        %v887 = vunpack.c.l.b16 %v848
        %v888 = vunpack.c.l.b16 %v849
        %v889 = vunpack.c.l.b16 %v850
        %v890 = vpack.c.b16 %v875, %v874
        %v891 = vpack.c.b16 %v877, %v876
        %v892 = vpack.c.b16 %v879, %v878
        %v893 = vpack.c.b16 %v881, %v880
        %v894 = vpack.c.b16 %v883, %v882
        %v895 = vpack.c.b16 %v885, %v884
        %v896 = vpack.c.b16 %v887, %v886
        %v897 = vpack.c.b16 %v889, %v888
        %906 = vmatprep.subr.bf16.mxu0 0
        %907 = vmatpush1.bf16.msra.mxu0 %v897
        %908 = vmatprep.subr.bf16.mxu0 0
        %909 = vmatpush1.bf16.msra.mxu0 %v896
        %910 = vmatprep.subr.bf16.mxu0 0
        %911 = vmatpush1.bf16.msra.mxu0 %v895
        %912 = vmatprep.subr.bf16.mxu0 0
        %913 = vmatpush1.bf16.msra.mxu0 %v894
        %914 = vmatprep.subr.bf16.mxu0 0
        %915 = vmatpush1.bf16.msra.mxu0 %v893
        %916 = vmatprep.subr.bf16.mxu0 0
        %917 = vmatpush1.bf16.msra.mxu0 %v892
        %918 = vmatprep.subr.bf16.mxu0 0
        %919 = vmatpush1.bf16.msra.mxu0 %v891
        %920 = vmatprep.subr.bf16.mxu0 0
        %921 = vmatpush1.bf16.msra.mxu0 %v890
        %922 = vmatprep.subr.bf16.mxu0 0
        %923 = vmatpush2.bf16.msra.mxu0 0
        %924 = vmatprep.subr.bf16.mxu0 0
        %925 = vmatpush2.bf16.msra.mxu0 0
        %926 = vmatprep.subr.bf16.mxu0 0
        %927 = vmatpush2.bf16.msra.mxu0 0
        %928 = vmatprep.subr.bf16.mxu0 0
        %929 = vmatpush2.bf16.msra.mxu0 0
        %930 = vmatprep.subr.bf16.mxu0 0
        %931 = vmatpush2.bf16.msra.mxu0 0
        %932 = vmatprep.subr.bf16.mxu0 0
        %933 = vmatpush2.bf16.msra.mxu0 0
        %934 = vmatprep.subr.bf16.mxu0 0
        %935 = vmatpush2.bf16.msra.mxu0 0
        %936 = vmatprep.subr.bf16.mxu0 0
        %937 = vmatpush2.bf16.msra.mxu0 0
        %938 = vmatprep.mubr.bf16.mxu0 0
        %939 = vmatmul.mubr.bf16.gmra.mxu0 %v819
        %v940 = vpop.f32.mrf.mxu0
        %v941 = vadd.f32 %v856, %v940
        %v942 = vpop.f32.mrf.mxu0
        %v943 = vpop.f32.mrf.mxu0
        %v944 = vadd.f32 %v856, %v943
        %v945 = vpop.f32.mrf.mxu0
        %946 = vmatprep.mubr.bf16.mxu0 0
        %947 = vmatmul.mubr.bf16.gmra.mxu0 %v820
        %v948 = vpop.f32.mrf.mxu0
        %v949 = vadd.f32 %v856, %v948
        %v950 = vpop.f32.mrf.mxu0
        %v951 = vpop.f32.mrf.mxu0
        %v952 = vadd.f32 %v856, %v951
        %v953 = vpop.f32.mrf.mxu0
        %954 = vmatprep.mubr.bf16.mxu0 0
        %955 = vmatmul.mubr.bf16.gmra.mxu0 %v821
        %v956 = vpop.f32.mrf.mxu0
        %v957 = vadd.f32 %v856, %v956
        %v958 = vpop.f32.mrf.mxu0
        %v959 = vpop.f32.mrf.mxu0
        %v960 = vadd.f32 %v856, %v959
        %v961 = vpop.f32.mrf.mxu0
        %962 = vmatprep.mubr.bf16.mxu0 0
        %963 = vmatmul.mubr.bf16.gmra.mxu0 %v822
        %v964 = vpop.f32.mrf.mxu0
        %v965 = vadd.f32 %v856, %v964
        %v966 = vpop.f32.mrf.mxu0
        %v967 = vpop.f32.mrf.mxu0
        %v968 = vadd.f32 %v856, %v967
        %v969 = vpop.f32.mrf.mxu0
        %970 = vmatprep.mubr.bf16.mxu0 0
        %971 = vmatmul.mubr.bf16.gmra.mxu0 %v823
        %v972 = vpop.f32.mrf.mxu0
        %v973 = vadd.f32 %v856, %v972
        %v974 = vpop.f32.mrf.mxu0
        %v975 = vpop.f32.mrf.mxu0
        %v976 = vadd.f32 %v856, %v975
        %v977 = vpop.f32.mrf.mxu0
        %978 = vmatprep.mubr.bf16.mxu0 0
        %979 = vmatmul.mubr.bf16.gmra.mxu0 %v824
        %v980 = vpop.f32.mrf.mxu0
        %v981 = vadd.f32 %v856, %v980
        %v982 = vpop.f32.mrf.mxu0
        %v983 = vpop.f32.mrf.mxu0
        %v984 = vadd.f32 %v856, %v983
        %v985 = vpop.f32.mrf.mxu0
        %986 = vmatprep.mubr.bf16.mxu0 0
        %987 = vmatmul.mubr.bf16.gmra.mxu0 %v825
        %v988 = vpop.f32.mrf.mxu0
        %v989 = vadd.f32 %v856, %v988
        %v990 = vpop.f32.mrf.mxu0
        %v991 = vpop.f32.mrf.mxu0
        %v992 = vadd.f32 %v856, %v991
        %v993 = vpop.f32.mrf.mxu0
        %994 = vmatprep.mubr.bf16.mxu0 0
        %995 = vmatmul.mubr.bf16.gmra.mxu0 %v826
        %v996 = vpop.f32.mrf.mxu0
        %v997 = vadd.f32 %v856, %v996
        %v998 = vpop.f32.mrf.mxu0
        %v999 = vpop.f32.mrf.mxu0
        %v1000 = vadd.f32 %v856, %v999
        %v1001 = vpop.f32.mrf.mxu0
        %1002 = vmatprep.mubr.bf16.mxu0 0
        %1003 = vmatmul.mubr.bf16.gmra.mxu0 %v827
        %v1004 = vpop.f32.mrf.mxu0
        %v1005 = vadd.f32 %v856, %v1004
        %v1006 = vpop.f32.mrf.mxu0
        %v1007 = vpop.f32.mrf.mxu0
        %v1008 = vadd.f32 %v856, %v1007
        %v1009 = vpop.f32.mrf.mxu0
        %1010 = vmatprep.mubr.bf16.mxu0 0
        %1011 = vmatmul.mubr.bf16.gmra.mxu0 %v828
        %v1012 = vpop.f32.mrf.mxu0
        %v1013 = vadd.f32 %v856, %v1012
        %v1014 = vpop.f32.mrf.mxu0
        %v1015 = vpop.f32.mrf.mxu0
        %v1016 = vadd.f32 %v856, %v1015
        %v1017 = vpop.f32.mrf.mxu0
        %1018 = vmatprep.mubr.bf16.mxu0 0
        %1019 = vmatmul.mubr.bf16.gmra.mxu0 %v829
        %v1020 = vpop.f32.mrf.mxu0
        %v1021 = vadd.f32 %v856, %v1020
        %v1022 = vpop.f32.mrf.mxu0
        %v1023 = vpop.f32.mrf.mxu0
        %v1024 = vadd.f32 %v856, %v1023
        %v1025 = vpop.f32.mrf.mxu0
        %1026 = vmatprep.mubr.bf16.mxu0 0
        %1027 = vmatmul.mubr.bf16.gmra.mxu0 %v830
        %v1028 = vpop.f32.mrf.mxu0
        %v1029 = vadd.f32 %v856, %v1028
        %v1030 = vpop.f32.mrf.mxu0
        %v1031 = vpop.f32.mrf.mxu0
        %v1032 = vadd.f32 %v856, %v1031
        %v1033 = vpop.f32.mrf.mxu0
        %1034 = vmatprep.mubr.bf16.mxu0 0
        %1035 = vmatmul.mubr.bf16.gmra.mxu0 %v831
        %v1036 = vpop.f32.mrf.mxu0
        %v1037 = vadd.f32 %v856, %v1036
        %v1038 = vpop.f32.mrf.mxu0
        %v1039 = vpop.f32.mrf.mxu0
        %v1040 = vadd.f32 %v856, %v1039
        %v1041 = vpop.f32.mrf.mxu0
        %1042 = vmatprep.mubr.bf16.mxu0 0
        %1043 = vmatmul.mubr.bf16.gmra.mxu0 %v832
        %v1044 = vpop.f32.mrf.mxu0
        %v1045 = vadd.f32 %v856, %v1044
        %v1046 = vpop.f32.mrf.mxu0
        %v1047 = vpop.f32.mrf.mxu0
        %v1048 = vadd.f32 %v856, %v1047
        %v1049 = vpop.f32.mrf.mxu0
        %1050 = vmatprep.mubr.bf16.mxu0 0
        %1051 = vmatmul.mubr.bf16.gmra.mxu0 %v833
        %v1052 = vpop.f32.mrf.mxu0
        %v1053 = vadd.f32 %v856, %v1052
        %v1054 = vpop.f32.mrf.mxu0
        %v1055 = vpop.f32.mrf.mxu0
        %v1056 = vadd.f32 %v856, %v1055
        %v1057 = vpop.f32.mrf.mxu0
        %1058 = vmatprep.mubr.bf16.mxu0 0
        %1059 = vmatmul.mubr.bf16.gmra.mxu0 %v834
        %v1060 = vpop.f32.mrf.mxu0
        %v1061 = vadd.f32 %v856, %v1060
        %v1062 = vpop.f32.mrf.mxu0
        %v1063 = vpop.f32.mrf.mxu0
        %v1064 = vadd.f32 %v856, %v1063
        %v1065 = vpop.f32.mrf.mxu0
        %1066 = vdwg.mxu0
        %v1067 = vmul.f32 %v941, 0.5
        %v1068 = vmul.f32 %v944, 0.5
        %v1069 = vmul.f32 %v949, 0.5
        %v1070 = vmul.f32 %v952, 0.5
        %v1071 = vmul.f32 %v957, 0.5
        %v1072 = vmul.f32 %v960, 0.5
        %v1073 = vmul.f32 %v965, 0.5
        %v1074 = vmul.f32 %v968, 0.5
        %v1075 = vmul.f32 %v973, 0.5
        %v1076 = vmul.f32 %v976, 0.5
        %v1077 = vmul.f32 %v981, 0.5
        %v1078 = vmul.f32 %v984, 0.5
        %v1079 = vmul.f32 %v989, 0.5
        %v1080 = vmul.f32 %v992, 0.5
        %v1081 = vmul.f32 %v997, 0.5
        %v1082 = vmul.f32 %v1000, 0.5
        %v1083 = vmul.f32 %v1005, 0.5
        %v1084 = vmul.f32 %v1008, 0.5
        %v1085 = vmul.f32 %v1013, 0.5
        %v1086 = vmul.f32 %v1016, 0.5
        %v1087 = vmul.f32 %v1021, 0.5
        %v1088 = vmul.f32 %v1024, 0.5
        %v1089 = vmul.f32 %v1029, 0.5
        %v1090 = vmul.f32 %v1032, 0.5
        %v1091 = vmul.f32 %v1037, 0.5
        %v1092 = vmul.f32 %v1040, 0.5
        %v1093 = vmul.f32 %v1045, 0.5
        %v1094 = vmul.f32 %v1048, 0.5
        %v1095 = vmul.f32 %v1053, 0.5
        %v1096 = vmul.f32 %v1056, 0.5
        %v1097 = vmul.f32 %v1061, 0.5
        %v1098 = vmul.f32 %v1064, 0.5
        %v1099 = vtanh.pop %v1067
        %v1100 = vtanh.pop %v1068
        %v1101 = vtanh.pop %v1069
        %v1102 = vtanh.pop %v1070
        %v1103 = vtanh.pop %v1071
        %v1104 = vtanh.pop %v1072
        %v1105 = vtanh.pop %v1073
        %v1106 = vtanh.pop %v1074
        %v1107 = vtanh.pop %v1075
        %v1108 = vtanh.pop %v1076
        %v1109 = vtanh.pop %v1077
        %v1110 = vtanh.pop %v1078
        %v1111 = vtanh.pop %v1079
        %v1112 = vtanh.pop %v1080
        %v1113 = vtanh.pop %v1081
        %v1114 = vtanh.pop %v1082
        %v1115 = vtanh.pop %v1083
        %v1116 = vtanh.pop %v1084
        %v1117 = vtanh.pop %v1085
        %v1118 = vtanh.pop %v1086
        %v1119 = vtanh.pop %v1087
        %v1120 = vtanh.pop %v1088
        %v1121 = vtanh.pop %v1089
        %v1122 = vtanh.pop %v1090
        %v1123 = vtanh.pop %v1091
        %v1124 = vtanh.pop %v1092
        %v1125 = vtanh.pop %v1093
        %v1126 = vtanh.pop %v1094
        %v1127 = vtanh.pop %v1095
        %v1128 = vtanh.pop %v1096
        %v1129 = vtanh.pop %v1097
        %v1130 = vtanh.pop %v1098
        %v1131 = vmul.f32 %v1099, 0.5
        %v1132 = vmul.f32 %v1100, 0.5
        %v1133 = vmul.f32 %v1101, 0.5
        %v1134 = vmul.f32 %v1102, 0.5
        %v1135 = vmul.f32 %v1103, 0.5
        %v1136 = vmul.f32 %v1104, 0.5
        %v1137 = vmul.f32 %v1105, 0.5
        %v1138 = vmul.f32 %v1106, 0.5
        %v1139 = vmul.f32 %v1107, 0.5
        %v1140 = vmul.f32 %v1108, 0.5
        %v1141 = vmul.f32 %v1109, 0.5
        %v1142 = vmul.f32 %v1110, 0.5
        %v1143 = vmul.f32 %v1111, 0.5
        %v1144 = vmul.f32 %v1112, 0.5
        %v1145 = vmul.f32 %v1113, 0.5
        %v1146 = vmul.f32 %v1114, 0.5
        %v1147 = vmul.f32 %v1115, 0.5
        %v1148 = vmul.f32 %v1116, 0.5
        %v1149 = vmul.f32 %v1117, 0.5
        %v1150 = vmul.f32 %v1118, 0.5
        %v1151 = vmul.f32 %v1119, 0.5
        %v1152 = vmul.f32 %v1120, 0.5
        %v1153 = vmul.f32 %v1121, 0.5
        %v1154 = vmul.f32 %v1122, 0.5
        %v1155 = vmul.f32 %v1123, 0.5
        %v1156 = vmul.f32 %v1124, 0.5
        %v1157 = vmul.f32 %v1125, 0.5
        %v1158 = vmul.f32 %v1126, 0.5
        %v1159 = vmul.f32 %v1127, 0.5
        %v1160 = vmul.f32 %v1128, 0.5
        %v1161 = vmul.f32 %v1129, 0.5
        %v1162 = vmul.f32 %v1130, 0.5
        %v1163 = vadd.f32 %v1131, 0.5
        %v1164 = vadd.f32 %v1132, 0.5
        %v1165 = vadd.f32 %v1133, 0.5
        %v1166 = vadd.f32 %v1134, 0.5
        %v1167 = vadd.f32 %v1135, 0.5
        %v1168 = vadd.f32 %v1136, 0.5
        %v1169 = vadd.f32 %v1137, 0.5
        %v1170 = vadd.f32 %v1138, 0.5
        %v1171 = vadd.f32 %v1139, 0.5
        %v1172 = vadd.f32 %v1140, 0.5
        %v1173 = vadd.f32 %v1141, 0.5
        %v1174 = vadd.f32 %v1142, 0.5
        %v1175 = vadd.f32 %v1143, 0.5
        %v1176 = vadd.f32 %v1144, 0.5
        %v1177 = vadd.f32 %v1145, 0.5
        %v1178 = vadd.f32 %v1146, 0.5
        %v1179 = vadd.f32 %v1147, 0.5
        %v1180 = vadd.f32 %v1148, 0.5
        %v1181 = vadd.f32 %v1149, 0.5
        %v1182 = vadd.f32 %v1150, 0.5
        %v1183 = vadd.f32 %v1151, 0.5
        %v1184 = vadd.f32 %v1152, 0.5
        %v1185 = vadd.f32 %v1153, 0.5
        %v1186 = vadd.f32 %v1154, 0.5
        %v1187 = vadd.f32 %v1155, 0.5
        %v1188 = vadd.f32 %v1156, 0.5
        %v1189 = vadd.f32 %v1157, 0.5
        %v1190 = vadd.f32 %v1158, 0.5
        %v1191 = vadd.f32 %v1159, 0.5
        %v1192 = vadd.f32 %v1160, 0.5
        %v1193 = vadd.f32 %v1161, 0.5
        %v1194 = vadd.f32 %v1162, 0.5
        %v1195 = vmul.f32 %v941, %v1163
        %v1196 = vmul.f32 %v944, %v1164
        %v1197 = vmul.f32 %v949, %v1165
        %v1198 = vmul.f32 %v952, %v1166
        %v1199 = vmul.f32 %v957, %v1167
        %v1200 = vmul.f32 %v960, %v1168
        %v1201 = vmul.f32 %v965, %v1169
        %v1202 = vmul.f32 %v968, %v1170
        %v1203 = vmul.f32 %v973, %v1171
        %v1204 = vmul.f32 %v976, %v1172
        %v1205 = vmul.f32 %v981, %v1173
        %v1206 = vmul.f32 %v984, %v1174
        %v1207 = vmul.f32 %v989, %v1175
        %v1208 = vmul.f32 %v992, %v1176
        %v1209 = vmul.f32 %v997, %v1177
        %v1210 = vmul.f32 %v1000, %v1178
        %v1211 = vmul.f32 %v1005, %v1179
        %v1212 = vmul.f32 %v1008, %v1180
        %v1213 = vmul.f32 %v1013, %v1181
        %v1214 = vmul.f32 %v1016, %v1182
        %v1215 = vmul.f32 %v1021, %v1183
        %v1216 = vmul.f32 %v1024, %v1184
        %v1217 = vmul.f32 %v1029, %v1185
        %v1218 = vmul.f32 %v1032, %v1186
        %v1219 = vmul.f32 %v1037, %v1187
        %v1220 = vmul.f32 %v1040, %v1188
        %v1221 = vmul.f32 %v1045, %v1189
        %v1222 = vmul.f32 %v1048, %v1190
        %v1223 = vmul.f32 %v1053, %v1191
        %v1224 = vmul.f32 %v1056, %v1192
        %v1225 = vmul.f32 %v1061, %v1193
        %v1226 = vmul.f32 %v1064, %v1194
        %v1227 = vpack.c.bf16 %v1196, %v1195
        %v1228 = vpack.c.bf16 %v1198, %v1197
        %v1229 = vpack.c.bf16 %v1200, %v1199
        %v1230 = vpack.c.bf16 %v1202, %v1201
        %v1231 = vpack.c.bf16 %v1204, %v1203
        %v1232 = vpack.c.bf16 %v1206, %v1205
        %v1233 = vpack.c.bf16 %v1208, %v1207
        %v1234 = vpack.c.bf16 %v1210, %v1209
        %v1235 = vpack.c.bf16 %v1212, %v1211
        %v1236 = vpack.c.bf16 %v1214, %v1213
        %v1237 = vpack.c.bf16 %v1216, %v1215
        %v1238 = vpack.c.bf16 %v1218, %v1217
        %v1239 = vpack.c.bf16 %v1220, %v1219
        %v1240 = vpack.c.bf16 %v1222, %v1221
        %v1241 = vpack.c.bf16 %v1224, %v1223
        %v1242 = vpack.c.bf16 %v1226, %v1225
        %v1243 = vld [vmem:[%s5] sm:$0xf]
        %v1244 = vld [vmem:[%s5 + $0x4] sm:$0xf]
        %v1245 = vld [vmem:[%s5 + $0x8] sm:$0xf]
        %v1246 = vld [vmem:[%s5 + $0xc] sm:$0xf]
        %v1247 = vld [vmem:[%s5 + $0x10] sm:$0xf]
        %v1248 = vld [vmem:[%s5 + $0x14] sm:$0xf]
        %v1249 = vld [vmem:[%s5 + $0x18] sm:$0xf]
        %v1250 = vld [vmem:[%s5 + $0x1c] sm:$0xf]
        %v1251 = vld [vmem:[%s5 + $0x20] sm:$0xf]
        %v1252 = vld [vmem:[%s5 + $0x24] sm:$0xf]
        %v1253 = vld [vmem:[%s5 + $0x28] sm:$0xf]
        %v1254 = vld [vmem:[%s5 + $0x2c] sm:$0xf]
        %v1255 = vld [vmem:[%s5 + $0x30] sm:$0xf]
        %v1256 = vld [vmem:[%s5 + $0x34] sm:$0xf]
        %v1257 = vld [vmem:[%s5 + $0x38] sm:$0xf]
        %v1258 = vld [vmem:[%s5 + $0x3c] sm:$0xf]
        %v1259 = vld [vmem:[%s6] sm:$0x1]
        %v1261 = vlaneseq
        %v1262 = vshrl.u32 %v1261, 7
        %v1263 = vsub.s32 0, %v1262
        %v1264 = vrot.slane %v1259, %v1263
        %v1282 = vunpack.c.l.b16 %v1243
        %v1283 = vunpack.c.l.b16 %v1244
        %v1284 = vunpack.c.l.b16 %v1245
        %v1285 = vunpack.c.l.b16 %v1246
        %v1286 = vunpack.c.l.b16 %v1247
        %v1287 = vunpack.c.l.b16 %v1248
        %v1288 = vunpack.c.l.b16 %v1249
        %v1289 = vunpack.c.l.b16 %v1250
        %v1290 = vunpack.c.l.b16 %v1251
        %v1291 = vunpack.c.l.b16 %v1252
        %v1292 = vunpack.c.l.b16 %v1253
        %v1293 = vunpack.c.l.b16 %v1254
        %v1294 = vunpack.c.l.b16 %v1255
        %v1295 = vunpack.c.l.b16 %v1256
        %v1296 = vunpack.c.l.b16 %v1257
        %v1297 = vunpack.c.l.b16 %v1258
        %v1298 = vpack.c.b16 %v1283, %v1282
        %v1299 = vpack.c.b16 %v1285, %v1284
        %v1300 = vpack.c.b16 %v1287, %v1286
        %v1301 = vpack.c.b16 %v1289, %v1288
        %v1302 = vpack.c.b16 %v1291, %v1290
        %v1303 = vpack.c.b16 %v1293, %v1292
        %v1304 = vpack.c.b16 %v1295, %v1294
        %v1305 = vpack.c.b16 %v1297, %v1296
        %1314 = vmatprep.subr.bf16.mxu0 0
        %1315 = vmatpush1.bf16.msra.mxu0 %v1305
        %1316 = vmatprep.subr.bf16.mxu0 0
        %1317 = vmatpush1.bf16.msra.mxu0 %v1304
        %1318 = vmatprep.subr.bf16.mxu0 0
        %1319 = vmatpush1.bf16.msra.mxu0 %v1303
        %1320 = vmatprep.subr.bf16.mxu0 0
        %1321 = vmatpush1.bf16.msra.mxu0 %v1302
        %1322 = vmatprep.subr.bf16.mxu0 0
        %1323 = vmatpush1.bf16.msra.mxu0 %v1301
        %1324 = vmatprep.subr.bf16.mxu0 0
        %1325 = vmatpush1.bf16.msra.mxu0 %v1300
        %1326 = vmatprep.subr.bf16.mxu0 0
        %1327 = vmatpush1.bf16.msra.mxu0 %v1299
        %1328 = vmatprep.subr.bf16.mxu0 0
        %1329 = vmatpush1.bf16.msra.mxu0 %v1298
        %1330 = vmatprep.subr.bf16.mxu0 0
        %1331 = vmatpush2.bf16.msra.mxu0 0
        %1332 = vmatprep.subr.bf16.mxu0 0
        %1333 = vmatpush2.bf16.msra.mxu0 0
        %1334 = vmatprep.subr.bf16.mxu0 0
        %1335 = vmatpush2.bf16.msra.mxu0 0
        %1336 = vmatprep.subr.bf16.mxu0 0
        %1337 = vmatpush2.bf16.msra.mxu0 0
        %1338 = vmatprep.subr.bf16.mxu0 0
        %1339 = vmatpush2.bf16.msra.mxu0 0
        %1340 = vmatprep.subr.bf16.mxu0 0
        %1341 = vmatpush2.bf16.msra.mxu0 0
        %1342 = vmatprep.subr.bf16.mxu0 0
        %1343 = vmatpush2.bf16.msra.mxu0 0
        %1344 = vmatprep.subr.bf16.mxu0 0
        %1345 = vmatpush2.bf16.msra.mxu0 0
        %1346 = vmatprep.mubr.bf16.mxu0 0
        %1347 = vmatmul.mubr.bf16.gmra.mxu0 %v1227
        %v1348 = vpop.f32.mrf.mxu0
        %v1349 = vadd.f32 %v1264, %v1348
        %v1350 = vpop.f32.mrf.mxu0
        %v1351 = vpop.f32.mrf.mxu0
        %v1352 = vadd.f32 %v1264, %v1351
        %v1353 = vpop.f32.mrf.mxu0
        %1354 = vmatprep.mubr.bf16.mxu0 0
        %1355 = vmatmul.mubr.bf16.gmra.mxu0 %v1228
        %v1356 = vpop.f32.mrf.mxu0
        %v1357 = vadd.f32 %v1264, %v1356
        %v1358 = vpop.f32.mrf.mxu0
        %v1359 = vpop.f32.mrf.mxu0
        %v1360 = vadd.f32 %v1264, %v1359
        %v1361 = vpop.f32.mrf.mxu0
        %1362 = vmatprep.mubr.bf16.mxu0 0
        %1363 = vmatmul.mubr.bf16.gmra.mxu0 %v1229
        %v1364 = vpop.f32.mrf.mxu0
        %v1365 = vadd.f32 %v1264, %v1364
        %v1366 = vpop.f32.mrf.mxu0
        %v1367 = vpop.f32.mrf.mxu0
        %v1368 = vadd.f32 %v1264, %v1367
        %v1369 = vpop.f32.mrf.mxu0
        %1370 = vmatprep.mubr.bf16.mxu0 0
        %1371 = vmatmul.mubr.bf16.gmra.mxu0 %v1230
        %v1372 = vpop.f32.mrf.mxu0
        %v1373 = vadd.f32 %v1264, %v1372
        %v1374 = vpop.f32.mrf.mxu0
        %v1375 = vpop.f32.mrf.mxu0
        %v1376 = vadd.f32 %v1264, %v1375
        %v1377 = vpop.f32.mrf.mxu0
        %1378 = vmatprep.mubr.bf16.mxu0 0
        %1379 = vmatmul.mubr.bf16.gmra.mxu0 %v1231
        %v1380 = vpop.f32.mrf.mxu0
        %v1381 = vadd.f32 %v1264, %v1380
        %v1382 = vpop.f32.mrf.mxu0
        %v1383 = vpop.f32.mrf.mxu0
        %v1384 = vadd.f32 %v1264, %v1383
        %v1385 = vpop.f32.mrf.mxu0
        %1386 = vmatprep.mubr.bf16.mxu0 0
        %1387 = vmatmul.mubr.bf16.gmra.mxu0 %v1232
        %v1388 = vpop.f32.mrf.mxu0
        %v1389 = vadd.f32 %v1264, %v1388
        %v1390 = vpop.f32.mrf.mxu0
        %v1391 = vpop.f32.mrf.mxu0
        %v1392 = vadd.f32 %v1264, %v1391
        %v1393 = vpop.f32.mrf.mxu0
        %1394 = vmatprep.mubr.bf16.mxu0 0
        %1395 = vmatmul.mubr.bf16.gmra.mxu0 %v1233
        %v1396 = vpop.f32.mrf.mxu0
        %v1397 = vadd.f32 %v1264, %v1396
        %v1398 = vpop.f32.mrf.mxu0
        %v1399 = vpop.f32.mrf.mxu0
        %v1400 = vadd.f32 %v1264, %v1399
        %v1401 = vpop.f32.mrf.mxu0
        %1402 = vmatprep.mubr.bf16.mxu0 0
        %1403 = vmatmul.mubr.bf16.gmra.mxu0 %v1234
        %v1404 = vpop.f32.mrf.mxu0
        %v1405 = vadd.f32 %v1264, %v1404
        %v1406 = vpop.f32.mrf.mxu0
        %v1407 = vpop.f32.mrf.mxu0
        %v1408 = vadd.f32 %v1264, %v1407
        %v1409 = vpop.f32.mrf.mxu0
        %1410 = vmatprep.mubr.bf16.mxu0 0
        %1411 = vmatmul.mubr.bf16.gmra.mxu0 %v1235
        %v1412 = vpop.f32.mrf.mxu0
        %v1413 = vadd.f32 %v1264, %v1412
        %v1414 = vpop.f32.mrf.mxu0
        %v1415 = vpop.f32.mrf.mxu0
        %v1416 = vadd.f32 %v1264, %v1415
        %v1417 = vpop.f32.mrf.mxu0
        %1418 = vmatprep.mubr.bf16.mxu0 0
        %1419 = vmatmul.mubr.bf16.gmra.mxu0 %v1236
        %v1420 = vpop.f32.mrf.mxu0
        %v1421 = vadd.f32 %v1264, %v1420
        %v1422 = vpop.f32.mrf.mxu0
        %v1423 = vpop.f32.mrf.mxu0
        %v1424 = vadd.f32 %v1264, %v1423
        %v1425 = vpop.f32.mrf.mxu0
        %1426 = vmatprep.mubr.bf16.mxu0 0
        %1427 = vmatmul.mubr.bf16.gmra.mxu0 %v1237
        %v1428 = vpop.f32.mrf.mxu0
        %v1429 = vadd.f32 %v1264, %v1428
        %v1430 = vpop.f32.mrf.mxu0
        %v1431 = vpop.f32.mrf.mxu0
        %v1432 = vadd.f32 %v1264, %v1431
        %v1433 = vpop.f32.mrf.mxu0
        %1434 = vmatprep.mubr.bf16.mxu0 0
        %1435 = vmatmul.mubr.bf16.gmra.mxu0 %v1238
        %v1436 = vpop.f32.mrf.mxu0
        %v1437 = vadd.f32 %v1264, %v1436
        %v1438 = vpop.f32.mrf.mxu0
        %v1439 = vpop.f32.mrf.mxu0
        %v1440 = vadd.f32 %v1264, %v1439
        %v1441 = vpop.f32.mrf.mxu0
        %1442 = vmatprep.mubr.bf16.mxu0 0
        %1443 = vmatmul.mubr.bf16.gmra.mxu0 %v1239
        %v1444 = vpop.f32.mrf.mxu0
        %v1445 = vadd.f32 %v1264, %v1444
        %v1446 = vpop.f32.mrf.mxu0
        %v1447 = vpop.f32.mrf.mxu0
        %v1448 = vadd.f32 %v1264, %v1447
        %v1449 = vpop.f32.mrf.mxu0
        %1450 = vmatprep.mubr.bf16.mxu0 0
        %1451 = vmatmul.mubr.bf16.gmra.mxu0 %v1240
        %v1452 = vpop.f32.mrf.mxu0
        %v1453 = vadd.f32 %v1264, %v1452
        %v1454 = vpop.f32.mrf.mxu0
        %v1455 = vpop.f32.mrf.mxu0
        %v1456 = vadd.f32 %v1264, %v1455
        %v1457 = vpop.f32.mrf.mxu0
        %1458 = vmatprep.mubr.bf16.mxu0 0
        %1459 = vmatmul.mubr.bf16.gmra.mxu0 %v1241
        %v1460 = vpop.f32.mrf.mxu0
        %v1461 = vadd.f32 %v1264, %v1460
        %v1462 = vpop.f32.mrf.mxu0
        %v1463 = vpop.f32.mrf.mxu0
        %v1464 = vadd.f32 %v1264, %v1463
        %v1465 = vpop.f32.mrf.mxu0
        %1466 = vmatprep.mubr.bf16.mxu0 0
        %1467 = vmatmul.mubr.bf16.gmra.mxu0 %v1242
        %v1468 = vpop.f32.mrf.mxu0
        %v1469 = vadd.f32 %v1264, %v1468
        %v1470 = vpop.f32.mrf.mxu0
        %v1471 = vpop.f32.mrf.mxu0
        %v1472 = vadd.f32 %v1264, %v1471
        %v1473 = vpop.f32.mrf.mxu0
        %1474 = vdwg.mxu0
        %v1475 = vmul.f32 %v1349, 0.5
        %v1476 = vmul.f32 %v1352, 0.5
        %v1477 = vmul.f32 %v1357, 0.5
        %v1478 = vmul.f32 %v1360, 0.5
        %v1479 = vmul.f32 %v1365, 0.5
        %v1480 = vmul.f32 %v1368, 0.5
        %v1481 = vmul.f32 %v1373, 0.5
        %v1482 = vmul.f32 %v1376, 0.5
        %v1483 = vmul.f32 %v1381, 0.5
        %v1484 = vmul.f32 %v1384, 0.5
        %v1485 = vmul.f32 %v1389, 0.5
        %v1486 = vmul.f32 %v1392, 0.5
        %v1487 = vmul.f32 %v1397, 0.5
        %v1488 = vmul.f32 %v1400, 0.5
        %v1489 = vmul.f32 %v1405, 0.5
        %v1490 = vmul.f32 %v1408, 0.5
        %v1491 = vmul.f32 %v1413, 0.5
        %v1492 = vmul.f32 %v1416, 0.5
        %v1493 = vmul.f32 %v1421, 0.5
        %v1494 = vmul.f32 %v1424, 0.5
        %v1495 = vmul.f32 %v1429, 0.5
        %v1496 = vmul.f32 %v1432, 0.5
        %v1497 = vmul.f32 %v1437, 0.5
        %v1498 = vmul.f32 %v1440, 0.5
        %v1499 = vmul.f32 %v1445, 0.5
        %v1500 = vmul.f32 %v1448, 0.5
        %v1501 = vmul.f32 %v1453, 0.5
        %v1502 = vmul.f32 %v1456, 0.5
        %v1503 = vmul.f32 %v1461, 0.5
        %v1504 = vmul.f32 %v1464, 0.5
        %v1505 = vmul.f32 %v1469, 0.5
        %v1506 = vmul.f32 %v1472, 0.5
        %v1507 = vtanh.pop %v1475
        %v1508 = vtanh.pop %v1476
        %v1509 = vtanh.pop %v1477
        %v1510 = vtanh.pop %v1478
        %v1511 = vtanh.pop %v1479
        %v1512 = vtanh.pop %v1480
        %v1513 = vtanh.pop %v1481
        %v1514 = vtanh.pop %v1482
        %v1515 = vtanh.pop %v1483
        %v1516 = vtanh.pop %v1484
        %v1517 = vtanh.pop %v1485
        %v1518 = vtanh.pop %v1486
        %v1519 = vtanh.pop %v1487
        %v1520 = vtanh.pop %v1488
        %v1521 = vtanh.pop %v1489
        %v1522 = vtanh.pop %v1490
        %v1523 = vtanh.pop %v1491
        %v1524 = vtanh.pop %v1492
        %v1525 = vtanh.pop %v1493
        %v1526 = vtanh.pop %v1494
        %v1527 = vtanh.pop %v1495
        %v1528 = vtanh.pop %v1496
        %v1529 = vtanh.pop %v1497
        %v1530 = vtanh.pop %v1498
        %v1531 = vtanh.pop %v1499
        %v1532 = vtanh.pop %v1500
        %v1533 = vtanh.pop %v1501
        %v1534 = vtanh.pop %v1502
        %v1535 = vtanh.pop %v1503
        %v1536 = vtanh.pop %v1504
        %v1537 = vtanh.pop %v1505
        %v1538 = vtanh.pop %v1506
        %v1539 = vmul.f32 %v1507, 0.5
        %v1540 = vmul.f32 %v1508, 0.5
        %v1541 = vmul.f32 %v1509, 0.5
        %v1542 = vmul.f32 %v1510, 0.5
        %v1543 = vmul.f32 %v1511, 0.5
        %v1544 = vmul.f32 %v1512, 0.5
        %v1545 = vmul.f32 %v1513, 0.5
        %v1546 = vmul.f32 %v1514, 0.5
        %v1547 = vmul.f32 %v1515, 0.5
        %v1548 = vmul.f32 %v1516, 0.5
        %v1549 = vmul.f32 %v1517, 0.5
        %v1550 = vmul.f32 %v1518, 0.5
        %v1551 = vmul.f32 %v1519, 0.5
        %v1552 = vmul.f32 %v1520, 0.5
        %v1553 = vmul.f32 %v1521, 0.5
        %v1554 = vmul.f32 %v1522, 0.5
        %v1555 = vmul.f32 %v1523, 0.5
        %v1556 = vmul.f32 %v1524, 0.5
        %v1557 = vmul.f32 %v1525, 0.5
        %v1558 = vmul.f32 %v1526, 0.5
        %v1559 = vmul.f32 %v1527, 0.5
        %v1560 = vmul.f32 %v1528, 0.5
        %v1561 = vmul.f32 %v1529, 0.5
        %v1562 = vmul.f32 %v1530, 0.5
        %v1563 = vmul.f32 %v1531, 0.5
        %v1564 = vmul.f32 %v1532, 0.5
        %v1565 = vmul.f32 %v1533, 0.5
        %v1566 = vmul.f32 %v1534, 0.5
        %v1567 = vmul.f32 %v1535, 0.5
        %v1568 = vmul.f32 %v1536, 0.5
        %v1569 = vmul.f32 %v1537, 0.5
        %v1570 = vmul.f32 %v1538, 0.5
        %v1571 = vadd.f32 %v1539, 0.5
        %v1572 = vadd.f32 %v1540, 0.5
        %v1573 = vadd.f32 %v1541, 0.5
        %v1574 = vadd.f32 %v1542, 0.5
        %v1575 = vadd.f32 %v1543, 0.5
        %v1576 = vadd.f32 %v1544, 0.5
        %v1577 = vadd.f32 %v1545, 0.5
        %v1578 = vadd.f32 %v1546, 0.5
        %v1579 = vadd.f32 %v1547, 0.5
        %v1580 = vadd.f32 %v1548, 0.5
        %v1581 = vadd.f32 %v1549, 0.5
        %v1582 = vadd.f32 %v1550, 0.5
        %v1583 = vadd.f32 %v1551, 0.5
        %v1584 = vadd.f32 %v1552, 0.5
        %v1585 = vadd.f32 %v1553, 0.5
        %v1586 = vadd.f32 %v1554, 0.5
        %v1587 = vadd.f32 %v1555, 0.5
        %v1588 = vadd.f32 %v1556, 0.5
        %v1589 = vadd.f32 %v1557, 0.5
        %v1590 = vadd.f32 %v1558, 0.5
        %v1591 = vadd.f32 %v1559, 0.5
        %v1592 = vadd.f32 %v1560, 0.5
        %v1593 = vadd.f32 %v1561, 0.5
        %v1594 = vadd.f32 %v1562, 0.5
        %v1595 = vadd.f32 %v1563, 0.5
        %v1596 = vadd.f32 %v1564, 0.5
        %v1597 = vadd.f32 %v1565, 0.5
        %v1598 = vadd.f32 %v1566, 0.5
        %v1599 = vadd.f32 %v1567, 0.5
        %v1600 = vadd.f32 %v1568, 0.5
        %v1601 = vadd.f32 %v1569, 0.5
        %v1602 = vadd.f32 %v1570, 0.5
        %v1603 = vmul.f32 %v1349, %v1571
        %v1604 = vmul.f32 %v1352, %v1572
        %v1605 = vmul.f32 %v1357, %v1573
        %v1606 = vmul.f32 %v1360, %v1574
        %v1607 = vmul.f32 %v1365, %v1575
        %v1608 = vmul.f32 %v1368, %v1576
        %v1609 = vmul.f32 %v1373, %v1577
        %v1610 = vmul.f32 %v1376, %v1578
        %v1611 = vmul.f32 %v1381, %v1579
        %v1612 = vmul.f32 %v1384, %v1580
        %v1613 = vmul.f32 %v1389, %v1581
        %v1614 = vmul.f32 %v1392, %v1582
        %v1615 = vmul.f32 %v1397, %v1583
        %v1616 = vmul.f32 %v1400, %v1584
        %v1617 = vmul.f32 %v1405, %v1585
        %v1618 = vmul.f32 %v1408, %v1586
        %v1619 = vmul.f32 %v1413, %v1587
        %v1620 = vmul.f32 %v1416, %v1588
        %v1621 = vmul.f32 %v1421, %v1589
        %v1622 = vmul.f32 %v1424, %v1590
        %v1623 = vmul.f32 %v1429, %v1591
        %v1624 = vmul.f32 %v1432, %v1592
        %v1625 = vmul.f32 %v1437, %v1593
        %v1626 = vmul.f32 %v1440, %v1594
        %v1627 = vmul.f32 %v1445, %v1595
        %v1628 = vmul.f32 %v1448, %v1596
        %v1629 = vmul.f32 %v1453, %v1597
        %v1630 = vmul.f32 %v1456, %v1598
        %v1631 = vmul.f32 %v1461, %v1599
        %v1632 = vmul.f32 %v1464, %v1600
        %v1633 = vmul.f32 %v1469, %v1601
        %v1634 = vmul.f32 %v1472, %v1602
        %v1635 = vpack.c.bf16 %v1604, %v1603
        %v1636 = vpack.c.bf16 %v1606, %v1605
        %v1637 = vpack.c.bf16 %v1608, %v1607
        %v1638 = vpack.c.bf16 %v1610, %v1609
        %v1639 = vpack.c.bf16 %v1612, %v1611
        %v1640 = vpack.c.bf16 %v1614, %v1613
        %v1641 = vpack.c.bf16 %v1616, %v1615
        %v1642 = vpack.c.bf16 %v1618, %v1617
        %v1643 = vpack.c.bf16 %v1620, %v1619
        %v1644 = vpack.c.bf16 %v1622, %v1621
        %v1645 = vpack.c.bf16 %v1624, %v1623
        %v1646 = vpack.c.bf16 %v1626, %v1625
        %v1647 = vpack.c.bf16 %v1628, %v1627
        %v1648 = vpack.c.bf16 %v1630, %v1629
        %v1649 = vpack.c.bf16 %v1632, %v1631
        %v1650 = vpack.c.bf16 %v1634, %v1633
        %v1651 = vld [vmem:[%s7] sm:$0xf]
        %v1652 = vld [vmem:[%s7 + $0x4] sm:$0xf]
        %v1653 = vld [vmem:[%s7 + $0x8] sm:$0xf]
        %v1654 = vld [vmem:[%s7 + $0xc] sm:$0xf]
        %v1655 = vld [vmem:[%s7 + $0x10] sm:$0xf]
        %v1656 = vld [vmem:[%s7 + $0x14] sm:$0xf]
        %v1657 = vld [vmem:[%s7 + $0x18] sm:$0xf]
        %v1658 = vld [vmem:[%s7 + $0x1c] sm:$0xf]
        %v1659 = vld [vmem:[%s7 + $0x20] sm:$0xf]
        %v1660 = vld [vmem:[%s7 + $0x24] sm:$0xf]
        %v1661 = vld [vmem:[%s7 + $0x28] sm:$0xf]
        %v1662 = vld [vmem:[%s7 + $0x2c] sm:$0xf]
        %v1663 = vld [vmem:[%s7 + $0x30] sm:$0xf]
        %v1664 = vld [vmem:[%s7 + $0x34] sm:$0xf]
        %v1665 = vld [vmem:[%s7 + $0x38] sm:$0xf]
        %v1666 = vld [vmem:[%s7 + $0x3c] sm:$0xf]
        %v1667 = vld [vmem:[%s8] sm:$0x1]
        %v1669 = vlaneseq
        %v1670 = vshrl.u32 %v1669, 7
        %v1671 = vsub.s32 0, %v1670
        %v1672 = vrot.slane %v1667, %v1671
        %v1690 = vunpack.c.l.b16 %v1651
        %v1691 = vunpack.c.l.b16 %v1652
        %v1692 = vunpack.c.l.b16 %v1653
        %v1693 = vunpack.c.l.b16 %v1654
        %v1694 = vunpack.c.l.b16 %v1655
        %v1695 = vunpack.c.l.b16 %v1656
        %v1696 = vunpack.c.l.b16 %v1657
        %v1697 = vunpack.c.l.b16 %v1658
        %v1698 = vunpack.c.l.b16 %v1659
        %v1699 = vunpack.c.l.b16 %v1660
        %v1700 = vunpack.c.l.b16 %v1661
        %v1701 = vunpack.c.l.b16 %v1662
        %v1702 = vunpack.c.l.b16 %v1663
        %v1703 = vunpack.c.l.b16 %v1664
        %v1704 = vunpack.c.l.b16 %v1665
        %v1705 = vunpack.c.l.b16 %v1666
        %v1706 = vpack.c.b16 %v1691, %v1690
        %v1707 = vpack.c.b16 %v1693, %v1692
        %v1708 = vpack.c.b16 %v1695, %v1694
        %v1709 = vpack.c.b16 %v1697, %v1696
        %v1710 = vpack.c.b16 %v1699, %v1698
        %v1711 = vpack.c.b16 %v1701, %v1700
        %v1712 = vpack.c.b16 %v1703, %v1702
        %v1713 = vpack.c.b16 %v1705, %v1704
        %1722 = vmatprep.subr.bf16.mxu0 0
        %1723 = vmatpush1.bf16.msra.mxu0 %v1713
        %1724 = vmatprep.subr.bf16.mxu0 0
        %1725 = vmatpush1.bf16.msra.mxu0 %v1712
        %1726 = vmatprep.subr.bf16.mxu0 0
        %1727 = vmatpush1.bf16.msra.mxu0 %v1711
        %1728 = vmatprep.subr.bf16.mxu0 0
        %1729 = vmatpush1.bf16.msra.mxu0 %v1710
        %1730 = vmatprep.subr.bf16.mxu0 0
        %1731 = vmatpush1.bf16.msra.mxu0 %v1709
        %1732 = vmatprep.subr.bf16.mxu0 0
        %1733 = vmatpush1.bf16.msra.mxu0 %v1708
        %1734 = vmatprep.subr.bf16.mxu0 0
        %1735 = vmatpush1.bf16.msra.mxu0 %v1707
        %1736 = vmatprep.subr.bf16.mxu0 0
        %1737 = vmatpush1.bf16.msra.mxu0 %v1706
        %1738 = vmatprep.subr.bf16.mxu0 0
        %1739 = vmatpush2.bf16.msra.mxu0 0
        %1740 = vmatprep.subr.bf16.mxu0 0
        %1741 = vmatpush2.bf16.msra.mxu0 0
        %1742 = vmatprep.subr.bf16.mxu0 0
        %1743 = vmatpush2.bf16.msra.mxu0 0
        %1744 = vmatprep.subr.bf16.mxu0 0
        %1745 = vmatpush2.bf16.msra.mxu0 0
        %1746 = vmatprep.subr.bf16.mxu0 0
        %1747 = vmatpush2.bf16.msra.mxu0 0
        %1748 = vmatprep.subr.bf16.mxu0 0
        %1749 = vmatpush2.bf16.msra.mxu0 0
        %1750 = vmatprep.subr.bf16.mxu0 0
        %1751 = vmatpush2.bf16.msra.mxu0 0
        %1752 = vmatprep.subr.bf16.mxu0 0
        %1753 = vmatpush2.bf16.msra.mxu0 0
        %1754 = vmatprep.mubr.bf16.mxu0 0
        %1755 = vmatmul.mubr.bf16.gmra.mxu0 %v1635
        %v1756 = vpop.f32.mrf.mxu0
        %v1757 = vadd.f32 %v1672, %v1756
        %v1758 = vpop.f32.mrf.mxu0
        %v1759 = vpop.f32.mrf.mxu0
        %v1760 = vadd.f32 %v1672, %v1759
        %v1761 = vpop.f32.mrf.mxu0
        %1762 = vmatprep.mubr.bf16.mxu0 0
        %1763 = vmatmul.mubr.bf16.gmra.mxu0 %v1636
        %v1764 = vpop.f32.mrf.mxu0
        %v1765 = vadd.f32 %v1672, %v1764
        %v1766 = vpop.f32.mrf.mxu0
        %v1767 = vpop.f32.mrf.mxu0
        %v1768 = vadd.f32 %v1672, %v1767
        %v1769 = vpop.f32.mrf.mxu0
        %1770 = vmatprep.mubr.bf16.mxu0 0
        %1771 = vmatmul.mubr.bf16.gmra.mxu0 %v1637
        %v1772 = vpop.f32.mrf.mxu0
        %v1773 = vadd.f32 %v1672, %v1772
        %v1774 = vpop.f32.mrf.mxu0
        %v1775 = vpop.f32.mrf.mxu0
        %v1776 = vadd.f32 %v1672, %v1775
        %v1777 = vpop.f32.mrf.mxu0
        %1778 = vmatprep.mubr.bf16.mxu0 0
        %1779 = vmatmul.mubr.bf16.gmra.mxu0 %v1638
        %v1780 = vpop.f32.mrf.mxu0
        %v1781 = vadd.f32 %v1672, %v1780
        %v1782 = vpop.f32.mrf.mxu0
        %v1783 = vpop.f32.mrf.mxu0
        %v1784 = vadd.f32 %v1672, %v1783
        %v1785 = vpop.f32.mrf.mxu0
        %1786 = vmatprep.mubr.bf16.mxu0 0
        %1787 = vmatmul.mubr.bf16.gmra.mxu0 %v1639
        %v1788 = vpop.f32.mrf.mxu0
        %v1789 = vadd.f32 %v1672, %v1788
        %v1790 = vpop.f32.mrf.mxu0
        %v1791 = vpop.f32.mrf.mxu0
        %v1792 = vadd.f32 %v1672, %v1791
        %v1793 = vpop.f32.mrf.mxu0
        %1794 = vmatprep.mubr.bf16.mxu0 0
        %1795 = vmatmul.mubr.bf16.gmra.mxu0 %v1640
        %v1796 = vpop.f32.mrf.mxu0
        %v1797 = vadd.f32 %v1672, %v1796
        %v1798 = vpop.f32.mrf.mxu0
        %v1799 = vpop.f32.mrf.mxu0
        %v1800 = vadd.f32 %v1672, %v1799
        %v1801 = vpop.f32.mrf.mxu0
        %1802 = vmatprep.mubr.bf16.mxu0 0
        %1803 = vmatmul.mubr.bf16.gmra.mxu0 %v1641
        %v1804 = vpop.f32.mrf.mxu0
        %v1805 = vadd.f32 %v1672, %v1804
        %v1806 = vpop.f32.mrf.mxu0
        %v1807 = vpop.f32.mrf.mxu0
        %v1808 = vadd.f32 %v1672, %v1807
        %v1809 = vpop.f32.mrf.mxu0
        %1810 = vmatprep.mubr.bf16.mxu0 0
        %1811 = vmatmul.mubr.bf16.gmra.mxu0 %v1642
        %v1812 = vpop.f32.mrf.mxu0
        %v1813 = vadd.f32 %v1672, %v1812
        %v1814 = vpop.f32.mrf.mxu0
        %v1815 = vpop.f32.mrf.mxu0
        %v1816 = vadd.f32 %v1672, %v1815
        %v1817 = vpop.f32.mrf.mxu0
        %1818 = vmatprep.mubr.bf16.mxu0 0
        %1819 = vmatmul.mubr.bf16.gmra.mxu0 %v1643
        %v1820 = vpop.f32.mrf.mxu0
        %v1821 = vadd.f32 %v1672, %v1820
        %v1822 = vpop.f32.mrf.mxu0
        %v1823 = vpop.f32.mrf.mxu0
        %v1824 = vadd.f32 %v1672, %v1823
        %v1825 = vpop.f32.mrf.mxu0
        %1826 = vmatprep.mubr.bf16.mxu0 0
        %1827 = vmatmul.mubr.bf16.gmra.mxu0 %v1644
        %v1828 = vpop.f32.mrf.mxu0
        %v1829 = vadd.f32 %v1672, %v1828
        %v1830 = vpop.f32.mrf.mxu0
        %v1831 = vpop.f32.mrf.mxu0
        %v1832 = vadd.f32 %v1672, %v1831
        %v1833 = vpop.f32.mrf.mxu0
        %1834 = vmatprep.mubr.bf16.mxu0 0
        %1835 = vmatmul.mubr.bf16.gmra.mxu0 %v1645
        %v1836 = vpop.f32.mrf.mxu0
        %v1837 = vadd.f32 %v1672, %v1836
        %v1838 = vpop.f32.mrf.mxu0
        %v1839 = vpop.f32.mrf.mxu0
        %v1840 = vadd.f32 %v1672, %v1839
        %v1841 = vpop.f32.mrf.mxu0
        %1842 = vmatprep.mubr.bf16.mxu0 0
        %1843 = vmatmul.mubr.bf16.gmra.mxu0 %v1646
        %v1844 = vpop.f32.mrf.mxu0
        %v1845 = vadd.f32 %v1672, %v1844
        %v1846 = vpop.f32.mrf.mxu0
        %v1847 = vpop.f32.mrf.mxu0
        %v1848 = vadd.f32 %v1672, %v1847
        %v1849 = vpop.f32.mrf.mxu0
        %1850 = vmatprep.mubr.bf16.mxu0 0
        %1851 = vmatmul.mubr.bf16.gmra.mxu0 %v1647
        %v1852 = vpop.f32.mrf.mxu0
        %v1853 = vadd.f32 %v1672, %v1852
        %v1854 = vpop.f32.mrf.mxu0
        %v1855 = vpop.f32.mrf.mxu0
        %v1856 = vadd.f32 %v1672, %v1855
        %v1857 = vpop.f32.mrf.mxu0
        %1858 = vmatprep.mubr.bf16.mxu0 0
        %1859 = vmatmul.mubr.bf16.gmra.mxu0 %v1648
        %v1860 = vpop.f32.mrf.mxu0
        %v1861 = vadd.f32 %v1672, %v1860
        %v1862 = vpop.f32.mrf.mxu0
        %v1863 = vpop.f32.mrf.mxu0
        %v1864 = vadd.f32 %v1672, %v1863
        %v1865 = vpop.f32.mrf.mxu0
        %1866 = vmatprep.mubr.bf16.mxu0 0
        %1867 = vmatmul.mubr.bf16.gmra.mxu0 %v1649
        %v1868 = vpop.f32.mrf.mxu0
        %v1869 = vadd.f32 %v1672, %v1868
        %v1870 = vpop.f32.mrf.mxu0
        %v1871 = vpop.f32.mrf.mxu0
        %v1872 = vadd.f32 %v1672, %v1871
        %v1873 = vpop.f32.mrf.mxu0
        %1874 = vmatprep.mubr.bf16.mxu0 0
        %1875 = vmatmul.mubr.bf16.gmra.mxu0 %v1650
        %v1876 = vpop.f32.mrf.mxu0
        %v1877 = vadd.f32 %v1672, %v1876
        %v1878 = vpop.f32.mrf.mxu0
        %v1879 = vpop.f32.mrf.mxu0
        %v1880 = vadd.f32 %v1672, %v1879
        %v1881 = vpop.f32.mrf.mxu0
        %1882 = vdwg.mxu0
        %v1883 = vmul.f32 %v1757, 0.5
        %v1884 = vmul.f32 %v1760, 0.5
        %v1885 = vmul.f32 %v1765, 0.5
        %v1886 = vmul.f32 %v1768, 0.5
        %v1887 = vmul.f32 %v1773, 0.5
        %v1888 = vmul.f32 %v1776, 0.5
        %v1889 = vmul.f32 %v1781, 0.5
        %v1890 = vmul.f32 %v1784, 0.5
        %v1891 = vmul.f32 %v1789, 0.5
        %v1892 = vmul.f32 %v1792, 0.5
        %v1893 = vmul.f32 %v1797, 0.5
        %v1894 = vmul.f32 %v1800, 0.5
        %v1895 = vmul.f32 %v1805, 0.5
        %v1896 = vmul.f32 %v1808, 0.5
        %v1897 = vmul.f32 %v1813, 0.5
        %v1898 = vmul.f32 %v1816, 0.5
        %v1899 = vmul.f32 %v1821, 0.5
        %v1900 = vmul.f32 %v1824, 0.5
        %v1901 = vmul.f32 %v1829, 0.5
        %v1902 = vmul.f32 %v1832, 0.5
        %v1903 = vmul.f32 %v1837, 0.5
        %v1904 = vmul.f32 %v1840, 0.5
        %v1905 = vmul.f32 %v1845, 0.5
        %v1906 = vmul.f32 %v1848, 0.5
        %v1907 = vmul.f32 %v1853, 0.5
        %v1908 = vmul.f32 %v1856, 0.5
        %v1909 = vmul.f32 %v1861, 0.5
        %v1910 = vmul.f32 %v1864, 0.5
        %v1911 = vmul.f32 %v1869, 0.5
        %v1912 = vmul.f32 %v1872, 0.5
        %v1913 = vmul.f32 %v1877, 0.5
        %v1914 = vmul.f32 %v1880, 0.5
        %v1915 = vtanh.pop %v1883
        %v1916 = vtanh.pop %v1884
        %v1917 = vtanh.pop %v1885
        %v1918 = vtanh.pop %v1886
        %v1919 = vtanh.pop %v1887
        %v1920 = vtanh.pop %v1888
        %v1921 = vtanh.pop %v1889
        %v1922 = vtanh.pop %v1890
        %v1923 = vtanh.pop %v1891
        %v1924 = vtanh.pop %v1892
        %v1925 = vtanh.pop %v1893
        %v1926 = vtanh.pop %v1894
        %v1927 = vtanh.pop %v1895
        %v1928 = vtanh.pop %v1896
        %v1929 = vtanh.pop %v1897
        %v1930 = vtanh.pop %v1898
        %v1931 = vtanh.pop %v1899
        %v1932 = vtanh.pop %v1900
        %v1933 = vtanh.pop %v1901
        %v1934 = vtanh.pop %v1902
        %v1935 = vtanh.pop %v1903
        %v1936 = vtanh.pop %v1904
        %v1937 = vtanh.pop %v1905
        %v1938 = vtanh.pop %v1906
        %v1939 = vtanh.pop %v1907
        %v1940 = vtanh.pop %v1908
        %v1941 = vtanh.pop %v1909
        %v1942 = vtanh.pop %v1910
        %v1943 = vtanh.pop %v1911
        %v1944 = vtanh.pop %v1912
        %v1945 = vtanh.pop %v1913
        %v1946 = vtanh.pop %v1914
        %v1947 = vmul.f32 %v1915, 0.5
        %v1948 = vmul.f32 %v1916, 0.5
        %v1949 = vmul.f32 %v1917, 0.5
        %v1950 = vmul.f32 %v1918, 0.5
        %v1951 = vmul.f32 %v1919, 0.5
        %v1952 = vmul.f32 %v1920, 0.5
        %v1953 = vmul.f32 %v1921, 0.5
        %v1954 = vmul.f32 %v1922, 0.5
        %v1955 = vmul.f32 %v1923, 0.5
        %v1956 = vmul.f32 %v1924, 0.5
        %v1957 = vmul.f32 %v1925, 0.5
        %v1958 = vmul.f32 %v1926, 0.5
        %v1959 = vmul.f32 %v1927, 0.5
        %v1960 = vmul.f32 %v1928, 0.5
        %v1961 = vmul.f32 %v1929, 0.5
        %v1962 = vmul.f32 %v1930, 0.5
        %v1963 = vmul.f32 %v1931, 0.5
        %v1964 = vmul.f32 %v1932, 0.5
        %v1965 = vmul.f32 %v1933, 0.5
        %v1966 = vmul.f32 %v1934, 0.5
        %v1967 = vmul.f32 %v1935, 0.5
        %v1968 = vmul.f32 %v1936, 0.5
        %v1969 = vmul.f32 %v1937, 0.5
        %v1970 = vmul.f32 %v1938, 0.5
        %v1971 = vmul.f32 %v1939, 0.5
        %v1972 = vmul.f32 %v1940, 0.5
        %v1973 = vmul.f32 %v1941, 0.5
        %v1974 = vmul.f32 %v1942, 0.5
        %v1975 = vmul.f32 %v1943, 0.5
        %v1976 = vmul.f32 %v1944, 0.5
        %v1977 = vmul.f32 %v1945, 0.5
        %v1978 = vmul.f32 %v1946, 0.5
        %v1979 = vadd.f32 %v1947, 0.5
        %v1980 = vadd.f32 %v1948, 0.5
        %v1981 = vadd.f32 %v1949, 0.5
        %v1982 = vadd.f32 %v1950, 0.5
        %v1983 = vadd.f32 %v1951, 0.5
        %v1984 = vadd.f32 %v1952, 0.5
        %v1985 = vadd.f32 %v1953, 0.5
        %v1986 = vadd.f32 %v1954, 0.5
        %v1987 = vadd.f32 %v1955, 0.5
        %v1988 = vadd.f32 %v1956, 0.5
        %v1989 = vadd.f32 %v1957, 0.5
        %v1990 = vadd.f32 %v1958, 0.5
        %v1991 = vadd.f32 %v1959, 0.5
        %v1992 = vadd.f32 %v1960, 0.5
        %v1993 = vadd.f32 %v1961, 0.5
        %v1994 = vadd.f32 %v1962, 0.5
        %v1995 = vadd.f32 %v1963, 0.5
        %v1996 = vadd.f32 %v1964, 0.5
        %v1997 = vadd.f32 %v1965, 0.5
        %v1998 = vadd.f32 %v1966, 0.5
        %v1999 = vadd.f32 %v1967, 0.5
        %v2000 = vadd.f32 %v1968, 0.5
        %v2001 = vadd.f32 %v1969, 0.5
        %v2002 = vadd.f32 %v1970, 0.5
        %v2003 = vadd.f32 %v1971, 0.5
        %v2004 = vadd.f32 %v1972, 0.5
        %v2005 = vadd.f32 %v1973, 0.5
        %v2006 = vadd.f32 %v1974, 0.5
        %v2007 = vadd.f32 %v1975, 0.5
        %v2008 = vadd.f32 %v1976, 0.5
        %v2009 = vadd.f32 %v1977, 0.5
        %v2010 = vadd.f32 %v1978, 0.5
        %v2011 = vmul.f32 %v1757, %v1979
        %v2012 = vmul.f32 %v1760, %v1980
        %v2013 = vmul.f32 %v1765, %v1981
        %v2014 = vmul.f32 %v1768, %v1982
        %v2015 = vmul.f32 %v1773, %v1983
        %v2016 = vmul.f32 %v1776, %v1984
        %v2017 = vmul.f32 %v1781, %v1985
        %v2018 = vmul.f32 %v1784, %v1986
        %v2019 = vmul.f32 %v1789, %v1987
        %v2020 = vmul.f32 %v1792, %v1988
        %v2021 = vmul.f32 %v1797, %v1989
        %v2022 = vmul.f32 %v1800, %v1990
        %v2023 = vmul.f32 %v1805, %v1991
        %v2024 = vmul.f32 %v1808, %v1992
        %v2025 = vmul.f32 %v1813, %v1993
        %v2026 = vmul.f32 %v1816, %v1994
        %v2027 = vmul.f32 %v1821, %v1995
        %v2028 = vmul.f32 %v1824, %v1996
        %v2029 = vmul.f32 %v1829, %v1997
        %v2030 = vmul.f32 %v1832, %v1998
        %v2031 = vmul.f32 %v1837, %v1999
        %v2032 = vmul.f32 %v1840, %v2000
        %v2033 = vmul.f32 %v1845, %v2001
        %v2034 = vmul.f32 %v1848, %v2002
        %v2035 = vmul.f32 %v1853, %v2003
        %v2036 = vmul.f32 %v1856, %v2004
        %v2037 = vmul.f32 %v1861, %v2005
        %v2038 = vmul.f32 %v1864, %v2006
        %v2039 = vmul.f32 %v1869, %v2007
        %v2040 = vmul.f32 %v1872, %v2008
        %v2041 = vmul.f32 %v1877, %v2009
        %v2042 = vmul.f32 %v1880, %v2010
        %v2043 = vpack.c.bf16 %v2012, %v2011
        %v2044 = vpack.c.bf16 %v2014, %v2013
        %v2045 = vpack.c.bf16 %v2016, %v2015
        %v2046 = vpack.c.bf16 %v2018, %v2017
        %v2047 = vpack.c.bf16 %v2020, %v2019
        %v2048 = vpack.c.bf16 %v2022, %v2021
        %v2049 = vpack.c.bf16 %v2024, %v2023
        %v2050 = vpack.c.bf16 %v2026, %v2025
        %v2051 = vpack.c.bf16 %v2028, %v2027
        %v2052 = vpack.c.bf16 %v2030, %v2029
        %v2053 = vpack.c.bf16 %v2032, %v2031
        %v2054 = vpack.c.bf16 %v2034, %v2033
        %v2055 = vpack.c.bf16 %v2036, %v2035
        %v2056 = vpack.c.bf16 %v2038, %v2037
        %v2057 = vpack.c.bf16 %v2040, %v2039
        %v2058 = vpack.c.bf16 %v2042, %v2041
        %v2059 = vld [vmem:[%s9] sm:$0xf]
        %v2060 = vld [vmem:[%s9 + $0x4] sm:$0xf]
        %v2061 = vld [vmem:[%s9 + $0x8] sm:$0xf]
        %v2062 = vld [vmem:[%s9 + $0xc] sm:$0xf]
        %v2063 = vld [vmem:[%s9 + $0x10] sm:$0xf]
        %v2064 = vld [vmem:[%s9 + $0x14] sm:$0xf]
        %v2065 = vld [vmem:[%s9 + $0x18] sm:$0xf]
        %v2066 = vld [vmem:[%s9 + $0x1c] sm:$0xf]
        %v2067 = vld [vmem:[%s9 + $0x20] sm:$0xf]
        %v2068 = vld [vmem:[%s9 + $0x24] sm:$0xf]
        %v2069 = vld [vmem:[%s9 + $0x28] sm:$0xf]
        %v2070 = vld [vmem:[%s9 + $0x2c] sm:$0xf]
        %v2071 = vld [vmem:[%s9 + $0x30] sm:$0xf]
        %v2072 = vld [vmem:[%s9 + $0x34] sm:$0xf]
        %v2073 = vld [vmem:[%s9 + $0x38] sm:$0xf]
        %v2074 = vld [vmem:[%s9 + $0x3c] sm:$0xf]
        %v2075 = vld [vmem:[%s10] sm:$0x1]
        %v2077 = vlaneseq
        %v2078 = vshrl.u32 %v2077, 7
        %v2079 = vsub.s32 0, %v2078
        %v2080 = vrot.slane %v2075, %v2079
        %v2098 = vunpack.c.l.b16 %v2059
        %v2099 = vunpack.c.l.b16 %v2060
        %v2100 = vunpack.c.l.b16 %v2061
        %v2101 = vunpack.c.l.b16 %v2062
        %v2102 = vunpack.c.l.b16 %v2063
        %v2103 = vunpack.c.l.b16 %v2064
        %v2104 = vunpack.c.l.b16 %v2065
        %v2105 = vunpack.c.l.b16 %v2066
        %v2106 = vunpack.c.l.b16 %v2067
        %v2107 = vunpack.c.l.b16 %v2068
        %v2108 = vunpack.c.l.b16 %v2069
        %v2109 = vunpack.c.l.b16 %v2070
        %v2110 = vunpack.c.l.b16 %v2071
        %v2111 = vunpack.c.l.b16 %v2072
        %v2112 = vunpack.c.l.b16 %v2073
        %v2113 = vunpack.c.l.b16 %v2074
        %v2114 = vpack.c.b16 %v2099, %v2098
        %v2115 = vpack.c.b16 %v2101, %v2100
        %v2116 = vpack.c.b16 %v2103, %v2102
        %v2117 = vpack.c.b16 %v2105, %v2104
        %v2118 = vpack.c.b16 %v2107, %v2106
        %v2119 = vpack.c.b16 %v2109, %v2108
        %v2120 = vpack.c.b16 %v2111, %v2110
        %v2121 = vpack.c.b16 %v2113, %v2112
        %2130 = vmatprep.subr.bf16.mxu0 0
        %2131 = vmatpush1.bf16.msra.mxu0 %v2121
        %2132 = vmatprep.subr.bf16.mxu0 0
        %2133 = vmatpush1.bf16.msra.mxu0 %v2120
        %2134 = vmatprep.subr.bf16.mxu0 0
        %2135 = vmatpush1.bf16.msra.mxu0 %v2119
        %2136 = vmatprep.subr.bf16.mxu0 0
        %2137 = vmatpush1.bf16.msra.mxu0 %v2118
        %2138 = vmatprep.subr.bf16.mxu0 0
        %2139 = vmatpush1.bf16.msra.mxu0 %v2117
        %2140 = vmatprep.subr.bf16.mxu0 0
        %2141 = vmatpush1.bf16.msra.mxu0 %v2116
        %2142 = vmatprep.subr.bf16.mxu0 0
        %2143 = vmatpush1.bf16.msra.mxu0 %v2115
        %2144 = vmatprep.subr.bf16.mxu0 0
        %2145 = vmatpush1.bf16.msra.mxu0 %v2114
        %2146 = vmatprep.subr.bf16.mxu0 0
        %2147 = vmatpush2.bf16.msra.mxu0 0
        %2148 = vmatprep.subr.bf16.mxu0 0
        %2149 = vmatpush2.bf16.msra.mxu0 0
        %2150 = vmatprep.subr.bf16.mxu0 0
        %2151 = vmatpush2.bf16.msra.mxu0 0
        %2152 = vmatprep.subr.bf16.mxu0 0
        %2153 = vmatpush2.bf16.msra.mxu0 0
        %2154 = vmatprep.subr.bf16.mxu0 0
        %2155 = vmatpush2.bf16.msra.mxu0 0
        %2156 = vmatprep.subr.bf16.mxu0 0
        %2157 = vmatpush2.bf16.msra.mxu0 0
        %2158 = vmatprep.subr.bf16.mxu0 0
        %2159 = vmatpush2.bf16.msra.mxu0 0
        %2160 = vmatprep.subr.bf16.mxu0 0
        %2161 = vmatpush2.bf16.msra.mxu0 0
        %2162 = vmatprep.mubr.bf16.mxu0 0
        %2163 = vmatmul.mubr.bf16.gmra.mxu0 %v2043
        %v2164 = vpop.f32.mrf.mxu0
        %v2165 = vadd.f32 %v2080, %v2164
        %v2166 = vpop.f32.mrf.mxu0
        %v2167 = vpop.f32.mrf.mxu0
        %v2168 = vadd.f32 %v2080, %v2167
        %v2169 = vpop.f32.mrf.mxu0
        %2170 = vmatprep.mubr.bf16.mxu0 0
        %2171 = vmatmul.mubr.bf16.gmra.mxu0 %v2044
        %v2172 = vpop.f32.mrf.mxu0
        %v2173 = vadd.f32 %v2080, %v2172
        %v2174 = vpop.f32.mrf.mxu0
        %v2175 = vpop.f32.mrf.mxu0
        %v2176 = vadd.f32 %v2080, %v2175
        %v2177 = vpop.f32.mrf.mxu0
        %2178 = vmatprep.mubr.bf16.mxu0 0
        %2179 = vmatmul.mubr.bf16.gmra.mxu0 %v2045
        %v2180 = vpop.f32.mrf.mxu0
        %v2181 = vadd.f32 %v2080, %v2180
        %v2182 = vpop.f32.mrf.mxu0
        %v2183 = vpop.f32.mrf.mxu0
        %v2184 = vadd.f32 %v2080, %v2183
        %v2185 = vpop.f32.mrf.mxu0
        %2186 = vmatprep.mubr.bf16.mxu0 0
        %2187 = vmatmul.mubr.bf16.gmra.mxu0 %v2046
        %v2188 = vpop.f32.mrf.mxu0
        %v2189 = vadd.f32 %v2080, %v2188
        %v2190 = vpop.f32.mrf.mxu0
        %v2191 = vpop.f32.mrf.mxu0
        %v2192 = vadd.f32 %v2080, %v2191
        %v2193 = vpop.f32.mrf.mxu0
        %2194 = vmatprep.mubr.bf16.mxu0 0
        %2195 = vmatmul.mubr.bf16.gmra.mxu0 %v2047
        %v2196 = vpop.f32.mrf.mxu0
        %v2197 = vadd.f32 %v2080, %v2196
        %v2198 = vpop.f32.mrf.mxu0
        %v2199 = vpop.f32.mrf.mxu0
        %v2200 = vadd.f32 %v2080, %v2199
        %v2201 = vpop.f32.mrf.mxu0
        %2202 = vmatprep.mubr.bf16.mxu0 0
        %2203 = vmatmul.mubr.bf16.gmra.mxu0 %v2048
        %v2204 = vpop.f32.mrf.mxu0
        %v2205 = vadd.f32 %v2080, %v2204
        %v2206 = vpop.f32.mrf.mxu0
        %v2207 = vpop.f32.mrf.mxu0
        %v2208 = vadd.f32 %v2080, %v2207
        %v2209 = vpop.f32.mrf.mxu0
        %2210 = vmatprep.mubr.bf16.mxu0 0
        %2211 = vmatmul.mubr.bf16.gmra.mxu0 %v2049
        %v2212 = vpop.f32.mrf.mxu0
        %v2213 = vadd.f32 %v2080, %v2212
        %v2214 = vpop.f32.mrf.mxu0
        %v2215 = vpop.f32.mrf.mxu0
        %v2216 = vadd.f32 %v2080, %v2215
        %v2217 = vpop.f32.mrf.mxu0
        %2218 = vmatprep.mubr.bf16.mxu0 0
        %2219 = vmatmul.mubr.bf16.gmra.mxu0 %v2050
        %v2220 = vpop.f32.mrf.mxu0
        %v2221 = vadd.f32 %v2080, %v2220
        %v2222 = vpop.f32.mrf.mxu0
        %v2223 = vpop.f32.mrf.mxu0
        %v2224 = vadd.f32 %v2080, %v2223
        %v2225 = vpop.f32.mrf.mxu0
        %2226 = vmatprep.mubr.bf16.mxu0 0
        %2227 = vmatmul.mubr.bf16.gmra.mxu0 %v2051
        %v2228 = vpop.f32.mrf.mxu0
        %v2229 = vadd.f32 %v2080, %v2228
        %v2230 = vpop.f32.mrf.mxu0
        %v2231 = vpop.f32.mrf.mxu0
        %v2232 = vadd.f32 %v2080, %v2231
        %v2233 = vpop.f32.mrf.mxu0
        %2234 = vmatprep.mubr.bf16.mxu0 0
        %2235 = vmatmul.mubr.bf16.gmra.mxu0 %v2052
        %v2236 = vpop.f32.mrf.mxu0
        %v2237 = vadd.f32 %v2080, %v2236
        %v2238 = vpop.f32.mrf.mxu0
        %v2239 = vpop.f32.mrf.mxu0
        %v2240 = vadd.f32 %v2080, %v2239
        %v2241 = vpop.f32.mrf.mxu0
        %2242 = vmatprep.mubr.bf16.mxu0 0
        %2243 = vmatmul.mubr.bf16.gmra.mxu0 %v2053
        %v2244 = vpop.f32.mrf.mxu0
        %v2245 = vadd.f32 %v2080, %v2244
        %v2246 = vpop.f32.mrf.mxu0
        %v2247 = vpop.f32.mrf.mxu0
        %v2248 = vadd.f32 %v2080, %v2247
        %v2249 = vpop.f32.mrf.mxu0
        %2250 = vmatprep.mubr.bf16.mxu0 0
        %2251 = vmatmul.mubr.bf16.gmra.mxu0 %v2054
        %v2252 = vpop.f32.mrf.mxu0
        %v2253 = vadd.f32 %v2080, %v2252
        %v2254 = vpop.f32.mrf.mxu0
        %v2255 = vpop.f32.mrf.mxu0
        %v2256 = vadd.f32 %v2080, %v2255
        %v2257 = vpop.f32.mrf.mxu0
        %2258 = vmatprep.mubr.bf16.mxu0 0
        %2259 = vmatmul.mubr.bf16.gmra.mxu0 %v2055
        %v2260 = vpop.f32.mrf.mxu0
        %v2261 = vadd.f32 %v2080, %v2260
        %v2262 = vpop.f32.mrf.mxu0
        %v2263 = vpop.f32.mrf.mxu0
        %v2264 = vadd.f32 %v2080, %v2263
        %v2265 = vpop.f32.mrf.mxu0
        %2266 = vmatprep.mubr.bf16.mxu0 0
        %2267 = vmatmul.mubr.bf16.gmra.mxu0 %v2056
        %v2268 = vpop.f32.mrf.mxu0
        %v2269 = vadd.f32 %v2080, %v2268
        %v2270 = vpop.f32.mrf.mxu0
        %v2271 = vpop.f32.mrf.mxu0
        %v2272 = vadd.f32 %v2080, %v2271
        %v2273 = vpop.f32.mrf.mxu0
        %2274 = vmatprep.mubr.bf16.mxu0 0
        %2275 = vmatmul.mubr.bf16.gmra.mxu0 %v2057
        %v2276 = vpop.f32.mrf.mxu0
        %v2277 = vadd.f32 %v2080, %v2276
        %v2278 = vpop.f32.mrf.mxu0
        %v2279 = vpop.f32.mrf.mxu0
        %v2280 = vadd.f32 %v2080, %v2279
        %v2281 = vpop.f32.mrf.mxu0
        %2282 = vmatprep.mubr.bf16.mxu0 0
        %2283 = vmatmul.mubr.bf16.gmra.mxu0 %v2058
        %v2284 = vpop.f32.mrf.mxu0
        %v2285 = vadd.f32 %v2080, %v2284
        %v2286 = vpop.f32.mrf.mxu0
        %v2287 = vpop.f32.mrf.mxu0
        %v2288 = vadd.f32 %v2080, %v2287
        %v2289 = vpop.f32.mrf.mxu0
        %2290 = vdwg.mxu0
        %2291 = vst [vmem:[%s380] sm:$0xff] %v2165
        %2292 = vst [vmem:[%s380 + $0x8] sm:$0xff] %v2168
        %2293 = vst [vmem:[%s380 + $0x10] sm:$0xff] %v2173
        %2294 = vst [vmem:[%s380 + $0x18] sm:$0xff] %v2176
        %2295 = vst [vmem:[%s380 + $0x20] sm:$0xff] %v2181
        %2296 = vst [vmem:[%s380 + $0x28] sm:$0xff] %v2184
        %2297 = vst [vmem:[%s380 + $0x30] sm:$0xff] %v2189
        %2298 = vst [vmem:[%s380 + $0x38] sm:$0xff] %v2192
        %2299 = vst [vmem:[%s380 + $0x40] sm:$0xff] %v2197
        %2300 = vst [vmem:[%s380 + $0x48] sm:$0xff] %v2200
        %2301 = vst [vmem:[%s380 + $0x50] sm:$0xff] %v2205
        %2302 = vst [vmem:[%s380 + $0x58] sm:$0xff] %v2208
        %2303 = vst [vmem:[%s380 + $0x60] sm:$0xff] %v2213
        %2304 = vst [vmem:[%s380 + $0x68] sm:$0xff] %v2216
        %2305 = vst [vmem:[%s380 + $0x70] sm:$0xff] %v2221
        %2306 = vst [vmem:[%s380 + $0x78] sm:$0xff] %v2224
        %2307 = vst [vmem:[%s380 + $0x80] sm:$0xff] %v2229
        %2308 = vst [vmem:[%s380 + $0x88] sm:$0xff] %v2232
        %2309 = vst [vmem:[%s380 + $0x90] sm:$0xff] %v2237
        %2310 = vst [vmem:[%s380 + $0x98] sm:$0xff] %v2240
        %2311 = vst [vmem:[%s380 + $0xa0] sm:$0xff] %v2245
        %2312 = vst [vmem:[%s380 + $0xa8] sm:$0xff] %v2248
        %2313 = vst [vmem:[%s380 + $0xb0] sm:$0xff] %v2253
        %2314 = vst [vmem:[%s380 + $0xb8] sm:$0xff] %v2256
        %2315 = vst [vmem:[%s380 + $0xc0] sm:$0xff] %v2261
        %2316 = vst [vmem:[%s380 + $0xc8] sm:$0xff] %v2264
        %2317 = vst [vmem:[%s380 + $0xd0] sm:$0xff] %v2269
        %2318 = vst [vmem:[%s380 + $0xd8] sm:$0xff] %v2272
        %2319 = vst [vmem:[%s380 + $0xe0] sm:$0xff] %v2277
        %2320 = vst [vmem:[%s380 + $0xe8] sm:$0xff] %v2280
        %2321 = vst [vmem:[%s380 + $0xf0] sm:$0xff] %v2285
        %2322 = vst [vmem:[%s380 + $0xf8] sm:$0xff] %v2288
        %s2323 = sand.u32 %s269, 1
        %s2324 = scalar_lea.sflag [#allocation3], %s2323
        %s2325 = sand.u32 %s269, 1
        %s2326 = smul.addr %s2325, 256
        %s2327 = scalar_lea.vmem [#allocation2], %s2326
        // Predicated region
        $region65: #{tpu_custom_call.1} parent=63 // pred_check
          %p2328 = pneg %p279
        $region66: #{tpu_custom_call.1} parent=63 // pred_check_branch
          %2330 = sbr.rel (%p2328) target = $region68
        $region67: #{tpu_custom_call.1} parent=63 // pred_region
          %s2331 = smul.u32 32, %s25
          %s2333 = ssub.s32 4096, 4096
          %2334 = vsyncadd %s2324, %s2333
          %s2335 = smul.addr %s2331, 128
          %s2336 = scalar_lea.hbm %s11, %s2335
          %s2337 = sshll.u32 %s2327, 4
          %s2338 = int_to_ptr.vmem [resolvable:$true] %s2337
          %2343 = dma.vmem_to_hbm [thread:$0]  %s2338, 4096, %s2336, %s2324, 128, 128, 8
        $region68: #{tpu_custom_call.1} parent=63 // pred_fallthru
          _
      $region64: #{tpu_custom_call.1} parent=5 // pred_fallthru
        _
      %p2344 = scmp.le.s32.totalorder 2, %s20
      // Predicated region
      $region69: #{tpu_custom_call.1} parent=5 // pred_check
        %p2345 = pneg %p2344
      $region70: #{tpu_custom_call.1} parent=5 // pred_check_branch
        %2347 = sbr.rel (%p2345) target = $region72
      $region71: #{tpu_custom_call.1} parent=5 // pred_region
        %s2348 = ssub.s32 %s20, 2
        // Predicated region
        $region73: #{tpu_custom_call.1} parent=71 // pred_check
          %p2349 = pneg %p285
        $region74: #{tpu_custom_call.1} parent=71 // pred_check_branch
          %2351 = sbr.rel (%p2349) target = $region76
        $region75: #{tpu_custom_call.1} parent=71 // pred_region
          %s2352 = sand.u32 %s270, 1
          %s2353 = scalar_lea.sflag [#allocation3], %s2352
          %s2354 = sand.u32 %s270, 1
          %s2355 = smul.addr %s2354, 256
          %s2356 = scalar_lea.vmem [#allocation2], %s2355
          %2357 = dma.done %s2353, 4096
        $region76: #{tpu_custom_call.1} parent=71 // pred_fallthru
          _
      $region72: #{tpu_custom_call.1} parent=5 // pred_fallthru
        _
    $region6: #{tpu_custom_call.1} parent=1 // loop_footer
      %s24 = sadd.s32 1, %s20
    $region7: #{tpu_custom_call.1} parent=1 // loop_footer_branch
      %19 = sbr.rel target = $region3
    $region8: #{tpu_custom_call.1} parent=1 // loop_exit
      _
    %2358 = vsyncpa [#allocation3], 1
    %s2359 = scalar_lea.sflag [#allocation3], 1
    %2360 = vsyncpa %s2359, 1

</llo_original>
